<compile_context>
chip_gen: v7x
topology: tpu7x:2x2x1
jax: 0.10.0
libtpu: 0.0.40
codegen_flags: <defaults>
</compile_context>

<pallas_src>
import math

import jax
import jax.numpy as jnp
from jax import lax
from jax.experimental import pallas as pl
from jax.experimental.pallas import tpu as pltpu


def decoder_kernel(xcomb_ref, z_ref, wl_ref, bl_ref,
                   wi_ref, bi_ref, wh_ref, bhn_ref,
                   wof_ref, wob_ref, bo_ref,
                   pred_ref):
    B = z_ref.shape[0]
    H = bhn_ref.shape[-1] // 2
    S = xcomb_ref.shape[0] // B

    # latent_to_hidden followed by torch's row-major .view(2, B, H) (bug-for-bug fidelity).
    h_lin = (jnp.dot(z_ref[...], wl_ref[...], preferred_element_type=jnp.float32)
             + bl_ref[...])                                        # (B, 2H)
    h_all = h_lin.reshape(2, B, H)
    h_cat = jnp.concatenate([h_all[0], h_all[1]], axis=-1)         # (B, 2H) = [h_fwd | h_bwd]

    # Hoisted input-gate precompute for all timesteps & both directions in one MXU op.
    # 6H column layout: [f_r, b_r, f_z, b_z, f_n, b_n]; r/z biases (b_ih+b_hh) + n-gate b_ih folded.
    gi_all = (jnp.dot(xcomb_ref[...], wi_ref[...], preferred_element_type=jnp.float32)
              + bi_ref[...])                                       # (S*B, 6H)

    wh = wh_ref[...]                                               # (2H, 6H) block-diagonal
    bhn = bhn_ref[...]                                             # (1, 2H)  [bh_f_n | bh_b_n]

    hs = []
    for s in range(S):  # statically unrolled; S is a compile-time constant
        gi_t = gi_all[s * B:(s + 1) * B, :]   # (B, 6H): fwd gates of x[s], bwd gates of x[S-1-s]
        gh_t = jnp.dot(h_cat, wh, preferred_element_type=jnp.float32)   # (B, 6H), one MXU push
        rz = jax.nn.sigmoid(gi_t[:, :4 * H] + gh_t[:, :4 * H])
        r_cat = rz[:, :2 * H]
        z_cat = rz[:, 2 * H:]
        # PyTorch GRU: n = tanh(gi_n + r * (h @ Wh_n + b_hh_n))  -> bhn goes inside the r*.
        n_cat = jnp.tanh(gi_t[:, 4 * H:] + r_cat * (gh_t[:, 4 * H:] + bhn))
        h_cat = (1.0 - z_cat) * n_cat + z_cat * h_cat
        hs.append(h_cat)

    # Re-assemble time-ordered fwd/bwd outputs (bwd hidden produced at step s belongs to
    # output time S-1-s) and do the batched output projection with a single wide store.
    out_f = jnp.concatenate([hs[t][:, :H] for t in range(S)], axis=0)           # (S*B, H)
    out_b = jnp.concatenate([hs[S - 1 - t][:, H:] for t in range(S)], axis=0)   # (S*B, H)
    pred = (jnp.dot(out_f, wof_ref[...], preferred_element_type=jnp.float32)
            + jnp.dot(out_b, wob_ref[...], preferred_element_type=jnp.float32)
            + bo_ref[...])                                                      # (S*B, F)
    pred_ref[...] = pred


def _pack_params(params, zdims, hidden):
    """Pack per-gate GRU params into block-diagonal fused-gate operands (host-side)."""
    H = hidden
    zi = jnp.zeros((zdims, H), jnp.float32)
    zh = jnp.zeros((H, H), jnp.float32)
    wi_f, wi_b = params["wi_f"], params["wi_b"]      # (3, ZD, H), gate order (r, z, n)
    wh_f, wh_b = params["wh_f"], params["wh_b"]      # (3, H, H)
    bi_f, bi_b = params["bi_f"], params["bi_b"]      # (3, 1, H)
    bh_f, bh_b = params["bh_f"], params["bh_b"]      # (3, 1, H)

    # 6H column layout: [f_r, b_r, f_z, b_z, f_n, b_n]
    wi_bd = jnp.concatenate([
        jnp.concatenate([wi_f[0], zi, wi_f[1], zi, wi_f[2], zi], axis=1),
        jnp.concatenate([zi, wi_b[0], zi, wi_b[1], zi, wi_b[2]], axis=1)], axis=0)   # (2ZD, 6H)
    wh_bd = jnp.concatenate([
        jnp.concatenate([wh_f[0], zh, wh_f[1], zh, wh_f[2], zh], axis=1),
        jnp.concatenate([zh, wh_b[0], zh, wh_b[1], zh, wh_b[2]], axis=1)], axis=0)   # (2H, 6H)
    # r/z biases folded (b_ih + b_hh); n gate keeps b_ih only (b_hh_n is applied inside r*).
    bi_cat = jnp.concatenate([bi_f[0] + bh_f[0], bi_b[0] + bh_b[0],
                              bi_f[1] + bh_f[1], bi_b[1] + bh_b[1],
                              bi_f[2], bi_b[2]], axis=1)                             # (1, 6H)
    bhn_cat = jnp.concatenate([bh_f[2], bh_b[2]], axis=1)                            # (1, 2H)
    return wi_bd, wh_bd, bi_cat, bhn_cat


def decoder_forward(inputs, z, params):
    """inputs: (B, S, ZDIMS) batch-first (as in the PyTorch module); z: (B, ZDIMS)."""
    B, S, ZD = inputs.shape
    H = params["wh_f"].shape[-1]
    F = params["b_out"].shape[-1]

    x_sbz = jnp.transpose(inputs, (1, 0, 2)).astype(jnp.float32)       # (S, B, ZD)
    # row-block s of x_comb carries both x[s] (fwd direction) and x[S-1-s] (bwd direction)
    x_comb = jnp.concatenate([x_sbz, x_sbz[::-1]], axis=-1).reshape(S * B, 2 * ZD)

    wi_bd, wh_bd, bi_cat, bhn_cat = _pack_params(params, ZD, H)

    vmem = pl.BlockSpec(memory_space=pltpu.MemorySpace.VMEM)
    pred_flat = pl.pallas_call(
        decoder_kernel,
        out_shape=jax.ShapeDtypeStruct((S * B, F), jnp.float32),
        in_specs=[vmem] * 11,
        out_specs=vmem,
    )(x_comb, z.astype(jnp.float32),
      params["w_l2h"], params["b_l2h"],
      wi_bd, bi_cat, wh_bd, bhn_cat,
      params["w_out_f"], params["w_out_b"], params["b_out"])

    return jnp.transpose(pred_flat.reshape(S, B, F), (1, 0, 2))


def init_params(key, zdims, hidden, num_features):
    """Deterministic synthetic init (PyTorch-style uniform ranges, gate-split layout)."""
    ks = jax.random.split(key, 16)
    s_l = 1.0 / math.sqrt(zdims)
    s_h = 1.0 / math.sqrt(hidden)
    s_o = 1.0 / math.sqrt(2 * hidden)

    def u(k, shape, s):
        return jax.random.uniform(k, shape, jnp.float32, -s, s)

    return {
        # latent_to_hidden: Linear(ZDIMS, 2*H)  (stored transposed: (ZDIMS, 2H))
        "w_l2h": u(ks[0], (zdims, 2 * hidden), s_l),
        "b_l2h": u(ks[1], (1, 2 * hidden), s_l),
        # forward-direction GRU, gate order (r, z, n), each weight stored transposed
        "wi_f": u(ks[2], (3, zdims, hidden), s_h),
        "wh_f": u(ks[3], (3, hidden, hidden), s_h),
        "bi_f": u(ks[4], (3, 1, hidden), s_h),
        "bh_f": u(ks[5], (3, 1, hidden), s_h),
        # backward-direction GRU
        "wi_b": u(ks[6], (3, zdims, hidden), s_h),
        "wh_b": u(ks[7], (3, hidden, hidden), s_h),
        "bi_b": u(ks[8], (3, 1, hidden), s_h),
        "bh_b": u(ks[9], (3, 1, hidden), s_h),
        # hidden_to_output: Linear(2*H, NUM_FEATURES), split into fwd/bwd halves
        "w_out_f": u(ks[10], (hidden, num_features), s_o),
        "w_out_b": u(ks[11], (hidden, num_features), s_o),
        "b_out": u(ks[12], (1, num_features), s_o),
    }


def decoder_reference(inputs, z, params):
    """Pure-JAX reference with identical semantics (for a numerical sanity check)."""
    B, S, _ = inputs.shape
    H = params["wh_f"].shape[-1]
    x_sbz = jnp.transpose(inputs, (1, 0, 2))

    h_all = (z @ params["w_l2h"] + params["b_l2h"]).reshape(2, B, H)

    def run_dir(h0, wi, wh, bi, bh, xs):
        def step(h, x_t):
            gi_r = x_t @ wi[0] + bi[0]
            gi_z = x_t @ wi[1] + bi[1]
            gi_n = x_t @ wi[2] + bi[2]
            gh_r = h @ wh[0] + bh[0]
            gh_z = h @ wh[1] + bh[1]
            gh_n = h @ wh[2] + bh[2]
            r = jax.nn.sigmoid(gi_r + gh_r)
            u = jax.nn.sigmoid(gi_z + gh_z)
            n = jnp.tanh(gi_n + r * gh_n)
            h_new = (1.0 - u) * n + u * h
            return h_new, h_new
        _, outs = lax.scan(step, h0, xs)
        return outs

    out_f = run_dir(h_all[0], params["wi_f"], params["wh_f"],
                    params["bi_f"], params["bh_f"], x_sbz)
    out_b = run_dir(h_all[1], params["wi_b"], params["wh_b"],
                    params["bi_b"], params["bh_b"], x_sbz[::-1])[::-1]
    pred = out_f @ params["w_out_f"] + out_b @ params["w_out_b"] + params["b_out"]
    return jnp.transpose(pred, (1, 0, 2))


if __name__ == "__main__":
    # Small, forward-consistent shapes:
    #   NUM_FEATURES=12, TEMPORAL_WINDOW(seq)=8, ZDIMS=8, hidden_size_rec=32, batch=2
    B, S, ZD, H, F = 2, 8, 8, 32, 12

    key = jax.random.PRNGKey(0)
    k_in, k_z, k_p = jax.random.split(key, 3)
    inputs = jax.random.normal(k_in, (B, S, ZD), jnp.float32)
    z = jax.random.normal(k_z, (B, ZD), jnp.float32)
    params = init_params(k_p, ZD, H, F)

    pred = decoder_forward(inputs, z, params)
    pred = jax.block_until_ready(pred)

    ref = decoder_reference(inputs, z, params)
    assert pred.shape == (B, S, F), pred.shape
    assert bool(jnp.allclose(pred, ref, atol=5e-2, rtol=5e-2))

    print("KERNEL_OK")
</pallas_src>

<mosaic_0001>
module attributes {stable_mosaic.version = 11 : i64} {
  func.func @decoder_kernel(%arg0: memref<16x16xf32, #tpu.memory_space<vmem>>, %arg1: memref<2x8xf32, #tpu.memory_space<vmem>>, %arg2: memref<8x64xf32, #tpu.memory_space<vmem>>, %arg3: memref<1x64xf32, #tpu.memory_space<vmem>>, %arg4: memref<16x192xf32, #tpu.memory_space<vmem>>, %arg5: memref<1x192xf32, #tpu.memory_space<vmem>>, %arg6: memref<64x192xf32, #tpu.memory_space<vmem>>, %arg7: memref<1x64xf32, #tpu.memory_space<vmem>>, %arg8: memref<32x12xf32, #tpu.memory_space<vmem>>, %arg9: memref<32x12xf32, #tpu.memory_space<vmem>>, %arg10: memref<1x12xf32, #tpu.memory_space<vmem>>, %arg11: memref<16x12xf32, #tpu.memory_space<vmem>>) attributes {dimension_semantics = [], scalar_prefetch = 0 : i64, scratch_operands = 0 : i64, tpu.core_type = #tpu.core_type<tc>} {
    %c0 = arith.constant 0 : index
    %c0_0 = arith.constant 0 : index
    %0 = vector.load %arg1[%c0, %c0_0] : memref<2x8xf32, #tpu.memory_space<vmem>>, vector<2x8xf32>
    %c0_1 = arith.constant 0 : index
    %c0_2 = arith.constant 0 : index
    %1 = vector.load %arg2[%c0_1, %c0_2] : memref<8x64xf32, #tpu.memory_space<vmem>>, vector<8x64xf32>
    %cst = arith.constant dense<0.000000e+00> : vector<2x64xf32>
    %2 = tpu.matmul %0, %1, %cst {dimension_numbers = #tpu.dot_dimension_numbers<[1], [0], [0], [1], [0, 0, 1, 1], [], []>} : vector<2x8xf32>, vector<8x64xf32>, vector<2x64xf32> -> vector<2x64xf32>
    %c0_3 = arith.constant 0 : index
    %c0_4 = arith.constant 0 : index
    %3 = vector.load %arg3[%c0_3, %c0_4] : memref<1x64xf32, #tpu.memory_space<vmem>>, vector<1x64xf32>
    %4 = vector.broadcast %3 : vector<1x64xf32> to vector<2x64xf32>
    %5 = arith.addf %2, %4 : vector<2x64xf32>
    %6 = vector.shape_cast %5 : vector<2x64xf32> to vector<2x2x32xf32>
    %7 = vector.extract_strided_slice %6 {offsets = [0, 0, 0], sizes = [1, 2, 32], strides = [1, 1, 1]} : vector<2x2x32xf32> to vector<1x2x32xf32>
    %8 = vector.shape_cast %7 : vector<1x2x32xf32> to vector<2x32xf32>
    %9 = vector.extract_strided_slice %6 {offsets = [1, 0, 0], sizes = [1, 2, 32], strides = [1, 1, 1]} : vector<2x2x32xf32> to vector<1x2x32xf32>
    %10 = vector.shape_cast %9 : vector<1x2x32xf32> to vector<2x32xf32>
    %11 = tpu.concatenate %8, %10 in 1 : vector<2x32xf32>, vector<2x32xf32> -> vector<2x64xf32>
    %c0_5 = arith.constant 0 : index
    %c0_6 = arith.constant 0 : index
    %12 = vector.load %arg0[%c0_5, %c0_6] : memref<16x16xf32, #tpu.memory_space<vmem>>, vector<16x16xf32>
    %c0_7 = arith.constant 0 : index
    %c0_8 = arith.constant 0 : index
    %13 = vector.load %arg4[%c0_7, %c0_8] : memref<16x192xf32, #tpu.memory_space<vmem>>, vector<16x192xf32>
    %cst_9 = arith.constant dense<0.000000e+00> : vector<16x192xf32>
    %14 = tpu.matmul %12, %13, %cst_9 {dimension_numbers = #tpu.dot_dimension_numbers<[1], [0], [0], [1], [0, 0, 1, 1], [], []>} : vector<16x16xf32>, vector<16x192xf32>, vector<16x192xf32> -> vector<16x192xf32>
    %c0_10 = arith.constant 0 : index
    %c0_11 = arith.constant 0 : index
    %15 = vector.load %arg5[%c0_10, %c0_11] : memref<1x192xf32, #tpu.memory_space<vmem>>, vector<1x192xf32>
    %16 = vector.broadcast %15 : vector<1x192xf32> to vector<16x192xf32>
    %17 = arith.addf %14, %16 : vector<16x192xf32>
    %c0_12 = arith.constant 0 : index
    %c0_13 = arith.constant 0 : index
    %18 = vector.load %arg6[%c0_12, %c0_13] : memref<64x192xf32, #tpu.memory_space<vmem>>, vector<64x192xf32>
    %c0_14 = arith.constant 0 : index
    %c0_15 = arith.constant 0 : index
    %19 = vector.load %arg7[%c0_14, %c0_15] : memref<1x64xf32, #tpu.memory_space<vmem>>, vector<1x64xf32>
    %20 = vector.extract_strided_slice %17 {offsets = [0, 0], sizes = [2, 192], strides = [1, 1]} : vector<16x192xf32> to vector<2x192xf32>
    %cst_16 = arith.constant dense<0.000000e+00> : vector<2x192xf32>
    %21 = tpu.matmul %11, %18, %cst_16 {dimension_numbers = #tpu.dot_dimension_numbers<[1], [0], [0], [1], [0, 0, 1, 1], [], []>} : vector<2x64xf32>, vector<64x192xf32>, vector<2x192xf32> -> vector<2x192xf32>
    %22 = vector.extract_strided_slice %20 {offsets = [0, 0], sizes = [2, 128], strides = [1, 1]} : vector<2x192xf32> to vector<2x128xf32>
    %23 = vector.extract_strided_slice %21 {offsets = [0, 0], sizes = [2, 128], strides = [1, 1]} : vector<2x192xf32> to vector<2x128xf32>
    %24 = arith.addf %22, %23 : vector<2x128xf32>
    %25 = arith.negf %24 : vector<2x128xf32>
    %26 = math.exp %25 : vector<2x128xf32>
    %cst_17 = arith.constant 1.000000e+00 : f32
    %27 = vector.broadcast %cst_17 : f32 to vector<2x128xf32>
    %28 = arith.addf %27, %26 : vector<2x128xf32>
    %29 = arith.divf %27, %28 : vector<2x128xf32>
    %30 = vector.extract_strided_slice %29 {offsets = [0, 0], sizes = [2, 64], strides = [1, 1]} : vector<2x128xf32> to vector<2x64xf32>
    %31 = vector.extract_strided_slice %29 {offsets = [0, 64], sizes = [2, 64], strides = [1, 1]} : vector<2x128xf32> to vector<2x64xf32>
    %32 = vector.extract_strided_slice %20 {offsets = [0, 128], sizes = [2, 64], strides = [1, 1]} : vector<2x192xf32> to vector<2x64xf32>
    %33 = vector.extract_strided_slice %21 {offsets = [0, 128], sizes = [2, 64], strides = [1, 1]} : vector<2x192xf32> to vector<2x64xf32>
    %34 = vector.broadcast %19 : vector<1x64xf32> to vector<2x64xf32>
    %35 = arith.addf %33, %34 : vector<2x64xf32>
    %36 = arith.mulf %30, %35 : vector<2x64xf32>
    %37 = arith.addf %32, %36 : vector<2x64xf32>
    %38 = math.tanh %37 : vector<2x64xf32>
    %cst_18 = arith.constant 1.000000e+00 : f32
    %39 = vector.broadcast %cst_18 : f32 to vector<2x64xf32>
    %40 = arith.subf %39, %31 : vector<2x64xf32>
    %41 = arith.mulf %40, %38 : vector<2x64xf32>
    %42 = arith.mulf %31, %11 : vector<2x64xf32>
    %43 = arith.addf %41, %42 : vector<2x64xf32>
    %44 = vector.extract_strided_slice %17 {offsets = [2, 0], sizes = [2, 192], strides = [1, 1]} : vector<16x192xf32> to vector<2x192xf32>
    %cst_19 = arith.constant dense<0.000000e+00> : vector<2x192xf32>
    %45 = tpu.matmul %43, %18, %cst_19 {dimension_numbers = #tpu.dot_dimension_numbers<[1], [0], [0], [1], [0, 0, 1, 1], [], []>} : vector<2x64xf32>, vector<64x192xf32>, vector<2x192xf32> -> vector<2x192xf32>
    %46 = vector.extract_strided_slice %44 {offsets = [0, 0], sizes = [2, 128], strides = [1, 1]} : vector<2x192xf32> to vector<2x128xf32>
    %47 = vector.extract_strided_slice %45 {offsets = [0, 0], sizes = [2, 128], strides = [1, 1]} : vector<2x192xf32> to vector<2x128xf32>
    %48 = arith.addf %46, %47 : vector<2x128xf32>
    %49 = arith.negf %48 : vector<2x128xf32>
    %50 = math.exp %49 : vector<2x128xf32>
    %cst_20 = arith.constant 1.000000e+00 : f32
    %51 = vector.broadcast %cst_20 : f32 to vector<2x128xf32>
    %52 = arith.addf %51, %50 : vector<2x128xf32>
    %53 = arith.divf %51, %52 : vector<2x128xf32>
    %54 = vector.extract_strided_slice %53 {offsets = [0, 0], sizes = [2, 64], strides = [1, 1]} : vector<2x128xf32> to vector<2x64xf32>
    %55 = vector.extract_strided_slice %53 {offsets = [0, 64], sizes = [2, 64], strides = [1, 1]} : vector<2x128xf32> to vector<2x64xf32>
    %56 = vector.extract_strided_slice %44 {offsets = [0, 128], sizes = [2, 64], strides = [1, 1]} : vector<2x192xf32> to vector<2x64xf32>
    %57 = vector.extract_strided_slice %45 {offsets = [0, 128], sizes = [2, 64], strides = [1, 1]} : vector<2x192xf32> to vector<2x64xf32>
    %58 = vector.broadcast %19 : vector<1x64xf32> to vector<2x64xf32>
    %59 = arith.addf %57, %58 : vector<2x64xf32>
    %60 = arith.mulf %54, %59 : vector<2x64xf32>
    %61 = arith.addf %56, %60 : vector<2x64xf32>
    %62 = math.tanh %61 : vector<2x64xf32>
    %cst_21 = arith.constant 1.000000e+00 : f32
    %63 = vector.broadcast %cst_21 : f32 to vector<2x64xf32>
    %64 = arith.subf %63, %55 : vector<2x64xf32>
    %65 = arith.mulf %64, %62 : vector<2x64xf32>
    %66 = arith.mulf %55, %43 : vector<2x64xf32>
    %67 = arith.addf %65, %66 : vector<2x64xf32>
    %68 = vector.extract_strided_slice %17 {offsets = [4, 0], sizes = [2, 192], strides = [1, 1]} : vector<16x192xf32> to vector<2x192xf32>
    %cst_22 = arith.constant dense<0.000000e+00> : vector<2x192xf32>
    %69 = tpu.matmul %67, %18, %cst_22 {dimension_numbers = #tpu.dot_dimension_numbers<[1], [0], [0], [1], [0, 0, 1, 1], [], []>} : vector<2x64xf32>, vector<64x192xf32>, vector<2x192xf32> -> vector<2x192xf32>
    %70 = vector.extract_strided_slice %68 {offsets = [0, 0], sizes = [2, 128], strides = [1, 1]} : vector<2x192xf32> to vector<2x128xf32>
    %71 = vector.extract_strided_slice %69 {offsets = [0, 0], sizes = [2, 128], strides = [1, 1]} : vector<2x192xf32> to vector<2x128xf32>
    %72 = arith.addf %70, %71 : vector<2x128xf32>
    %73 = arith.negf %72 : vector<2x128xf32>
    %74 = math.exp %73 : vector<2x128xf32>
    %cst_23 = arith.constant 1.000000e+00 : f32
    %75 = vector.broadcast %cst_23 : f32 to vector<2x128xf32>
    %76 = arith.addf %75, %74 : vector<2x128xf32>
    %77 = arith.divf %75, %76 : vector<2x128xf32>
    %78 = vector.extract_strided_slice %77 {offsets = [0, 0], sizes = [2, 64], strides = [1, 1]} : vector<2x128xf32> to vector<2x64xf32>
    %79 = vector.extract_strided_slice %77 {offsets = [0, 64], sizes = [2, 64], strides = [1, 1]} : vector<2x128xf32> to vector<2x64xf32>
    %80 = vector.extract_strided_slice %68 {offsets = [0, 128], sizes = [2, 64], strides = [1, 1]} : vector<2x192xf32> to vector<2x64xf32>
    %81 = vector.extract_strided_slice %69 {offsets = [0, 128], sizes = [2, 64], strides = [1, 1]} : vector<2x192xf32> to vector<2x64xf32>
    %82 = vector.broadcast %19 : vector<1x64xf32> to vector<2x64xf32>
    %83 = arith.addf %81, %82 : vector<2x64xf32>
    %84 = arith.mulf %78, %83 : vector<2x64xf32>
    %85 = arith.addf %80, %84 : vector<2x64xf32>
    %86 = math.tanh %85 : vector<2x64xf32>
    %cst_24 = arith.constant 1.000000e+00 : f32
    %87 = vector.broadcast %cst_24 : f32 to vector<2x64xf32>
    %88 = arith.subf %87, %79 : vector<2x64xf32>
    %89 = arith.mulf %88, %86 : vector<2x64xf32>
    %90 = arith.mulf %79, %67 : vector<2x64xf32>
    %91 = arith.addf %89, %90 : vector<2x64xf32>
    %92 = vector.extract_strided_slice %17 {offsets = [6, 0], sizes = [2, 192], strides = [1, 1]} : vector<16x192xf32> to vector<2x192xf32>
    %cst_25 = arith.constant dense<0.000000e+00> : vector<2x192xf32>
    %93 = tpu.matmul %91, %18, %cst_25 {dimension_numbers = #tpu.dot_dimension_numbers<[1], [0], [0], [1], [0, 0, 1, 1], [], []>} : vector<2x64xf32>, vector<64x192xf32>, vector<2x192xf32> -> vector<2x192xf32>
    %94 = vector.extract_strided_slice %92 {offsets = [0, 0], sizes = [2, 128], strides = [1, 1]} : vector<2x192xf32> to vector<2x128xf32>
    %95 = vector.extract_strided_slice %93 {offsets = [0, 0], sizes = [2, 128], strides = [1, 1]} : vector<2x192xf32> to vector<2x128xf32>
    %96 = arith.addf %94, %95 : vector<2x128xf32>
    %97 = arith.negf %96 : vector<2x128xf32>
    %98 = math.exp %97 : vector<2x128xf32>
    %cst_26 = arith.constant 1.000000e+00 : f32
    %99 = vector.broadcast %cst_26 : f32 to vector<2x128xf32>
    %100 = arith.addf %99, %98 : vector<2x128xf32>
    %101 = arith.divf %99, %100 : vector<2x128xf32>
    %102 = vector.extract_strided_slice %101 {offsets = [0, 0], sizes = [2, 64], strides = [1, 1]} : vector<2x128xf32> to vector<2x64xf32>
    %103 = vector.extract_strided_slice %101 {offsets = [0, 64], sizes = [2, 64], strides = [1, 1]} : vector<2x128xf32> to vector<2x64xf32>
    %104 = vector.extract_strided_slice %92 {offsets = [0, 128], sizes = [2, 64], strides = [1, 1]} : vector<2x192xf32> to vector<2x64xf32>
    %105 = vector.extract_strided_slice %93 {offsets = [0, 128], sizes = [2, 64], strides = [1, 1]} : vector<2x192xf32> to vector<2x64xf32>
    %106 = vector.broadcast %19 : vector<1x64xf32> to vector<2x64xf32>
    %107 = arith.addf %105, %106 : vector<2x64xf32>
    %108 = arith.mulf %102, %107 : vector<2x64xf32>
    %109 = arith.addf %104, %108 : vector<2x64xf32>
    %110 = math.tanh %109 : vector<2x64xf32>
    %cst_27 = arith.constant 1.000000e+00 : f32
    %111 = vector.broadcast %cst_27 : f32 to vector<2x64xf32>
    %112 = arith.subf %111, %103 : vector<2x64xf32>
    %113 = arith.mulf %112, %110 : vector<2x64xf32>
    %114 = arith.mulf %103, %91 : vector<2x64xf32>
    %115 = arith.addf %113, %114 : vector<2x64xf32>
    %116 = vector.extract_strided_slice %17 {offsets = [8, 0], sizes = [2, 192], strides = [1, 1]} : vector<16x192xf32> to vector<2x192xf32>
    %cst_28 = arith.constant dense<0.000000e+00> : vector<2x192xf32>
    %117 = tpu.matmul %115, %18, %cst_28 {dimension_numbers = #tpu.dot_dimension_numbers<[1], [0], [0], [1], [0, 0, 1, 1], [], []>} : vector<2x64xf32>, vector<64x192xf32>, vector<2x192xf32> -> vector<2x192xf32>
    %118 = vector.extract_strided_slice %116 {offsets = [0, 0], sizes = [2, 128], strides = [1, 1]} : vector<2x192xf32> to vector<2x128xf32>
    %119 = vector.extract_strided_slice %117 {offsets = [0, 0], sizes = [2, 128], strides = [1, 1]} : vector<2x192xf32> to vector<2x128xf32>
    %120 = arith.addf %118, %119 : vector<2x128xf32>
    %121 = arith.negf %120 : vector<2x128xf32>
    %122 = math.exp %121 : vector<2x128xf32>
    %cst_29 = arith.constant 1.000000e+00 : f32
    %123 = vector.broadcast %cst_29 : f32 to vector<2x128xf32>
    %124 = arith.addf %123, %122 : vector<2x128xf32>
    %125 = arith.divf %123, %124 : vector<2x128xf32>
    %126 = vector.extract_strided_slice %125 {offsets = [0, 0], sizes = [2, 64], strides = [1, 1]} : vector<2x128xf32> to vector<2x64xf32>
    %127 = vector.extract_strided_slice %125 {offsets = [0, 64], sizes = [2, 64], strides = [1, 1]} : vector<2x128xf32> to vector<2x64xf32>
    %128 = vector.extract_strided_slice %116 {offsets = [0, 128], sizes = [2, 64], strides = [1, 1]} : vector<2x192xf32> to vector<2x64xf32>
    %129 = vector.extract_strided_slice %117 {offsets = [0, 128], sizes = [2, 64], strides = [1, 1]} : vector<2x192xf32> to vector<2x64xf32>
    %130 = vector.broadcast %19 : vector<1x64xf32> to vector<2x64xf32>
    %131 = arith.addf %129, %130 : vector<2x64xf32>
    %132 = arith.mulf %126, %131 : vector<2x64xf32>
    %133 = arith.addf %128, %132 : vector<2x64xf32>
    %134 = math.tanh %133 : vector<2x64xf32>
    %cst_30 = arith.constant 1.000000e+00 : f32
    %135 = vector.broadcast %cst_30 : f32 to vector<2x64xf32>
    %136 = arith.subf %135, %127 : vector<2x64xf32>
    %137 = arith.mulf %136, %134 : vector<2x64xf32>
    %138 = arith.mulf %127, %115 : vector<2x64xf32>
    %139 = arith.addf %137, %138 : vector<2x64xf32>
    %140 = vector.extract_strided_slice %17 {offsets = [10, 0], sizes = [2, 192], strides = [1, 1]} : vector<16x192xf32> to vector<2x192xf32>
    %cst_31 = arith.constant dense<0.000000e+00> : vector<2x192xf32>
    %141 = tpu.matmul %139, %18, %cst_31 {dimension_numbers = #tpu.dot_dimension_numbers<[1], [0], [0], [1], [0, 0, 1, 1], [], []>} : vector<2x64xf32>, vector<64x192xf32>, vector<2x192xf32> -> vector<2x192xf32>
    %142 = vector.extract_strided_slice %140 {offsets = [0, 0], sizes = [2, 128], strides = [1, 1]} : vector<2x192xf32> to vector<2x128xf32>
    %143 = vector.extract_strided_slice %141 {offsets = [0, 0], sizes = [2, 128], strides = [1, 1]} : vector<2x192xf32> to vector<2x128xf32>
    %144 = arith.addf %142, %143 : vector<2x128xf32>
    %145 = arith.negf %144 : vector<2x128xf32>
    %146 = math.exp %145 : vector<2x128xf32>
    %cst_32 = arith.constant 1.000000e+00 : f32
    %147 = vector.broadcast %cst_32 : f32 to vector<2x128xf32>
    %148 = arith.addf %147, %146 : vector<2x128xf32>
    %149 = arith.divf %147, %148 : vector<2x128xf32>
    %150 = vector.extract_strided_slice %149 {offsets = [0, 0], sizes = [2, 64], strides = [1, 1]} : vector<2x128xf32> to vector<2x64xf32>
    %151 = vector.extract_strided_slice %149 {offsets = [0, 64], sizes = [2, 64], strides = [1, 1]} : vector<2x128xf32> to vector<2x64xf32>
    %152 = vector.extract_strided_slice %140 {offsets = [0, 128], sizes = [2, 64], strides = [1, 1]} : vector<2x192xf32> to vector<2x64xf32>
    %153 = vector.extract_strided_slice %141 {offsets = [0, 128], sizes = [2, 64], strides = [1, 1]} : vector<2x192xf32> to vector<2x64xf32>
    %154 = vector.broadcast %19 : vector<1x64xf32> to vector<2x64xf32>
    %155 = arith.addf %153, %154 : vector<2x64xf32>
    %156 = arith.mulf %150, %155 : vector<2x64xf32>
    %157 = arith.addf %152, %156 : vector<2x64xf32>
    %158 = math.tanh %157 : vector<2x64xf32>
    %cst_33 = arith.constant 1.000000e+00 : f32
    %159 = vector.broadcast %cst_33 : f32 to vector<2x64xf32>
    %160 = arith.subf %159, %151 : vector<2x64xf32>
    %161 = arith.mulf %160, %158 : vector<2x64xf32>
    %162 = arith.mulf %151, %139 : vector<2x64xf32>
    %163 = arith.addf %161, %162 : vector<2x64xf32>
    %164 = vector.extract_strided_slice %17 {offsets = [12, 0], sizes = [2, 192], strides = [1, 1]} : vector<16x192xf32> to vector<2x192xf32>
    %cst_34 = arith.constant dense<0.000000e+00> : vector<2x192xf32>
    %165 = tpu.matmul %163, %18, %cst_34 {dimension_numbers = #tpu.dot_dimension_numbers<[1], [0], [0], [1], [0, 0, 1, 1], [], []>} : vector<2x64xf32>, vector<64x192xf32>, vector<2x192xf32> -> vector<2x192xf32>
    %166 = vector.extract_strided_slice %164 {offsets = [0, 0], sizes = [2, 128], strides = [1, 1]} : vector<2x192xf32> to vector<2x128xf32>
    %167 = vector.extract_strided_slice %165 {offsets = [0, 0], sizes = [2, 128], strides = [1, 1]} : vector<2x192xf32> to vector<2x128xf32>
    %168 = arith.addf %166, %167 : vector<2x128xf32>
    %169 = arith.negf %168 : vector<2x128xf32>
    %170 = math.exp %169 : vector<2x128xf32>
    %cst_35 = arith.constant 1.000000e+00 : f32
    %171 = vector.broadcast %cst_35 : f32 to vector<2x128xf32>
    %172 = arith.addf %171, %170 : vector<2x128xf32>
    %173 = arith.divf %171, %172 : vector<2x128xf32>
    %174 = vector.extract_strided_slice %173 {offsets = [0, 0], sizes = [2, 64], strides = [1, 1]} : vector<2x128xf32> to vector<2x64xf32>
    %175 = vector.extract_strided_slice %173 {offsets = [0, 64], sizes = [2, 64], strides = [1, 1]} : vector<2x128xf32> to vector<2x64xf32>
    %176 = vector.extract_strided_slice %164 {offsets = [0, 128], sizes = [2, 64], strides = [1, 1]} : vector<2x192xf32> to vector<2x64xf32>
    %177 = vector.extract_strided_slice %165 {offsets = [0, 128], sizes = [2, 64], strides = [1, 1]} : vector<2x192xf32> to vector<2x64xf32>
    %178 = vector.broadcast %19 : vector<1x64xf32> to vector<2x64xf32>
    %179 = arith.addf %177, %178 : vector<2x64xf32>
    %180 = arith.mulf %174, %179 : vector<2x64xf32>
    %181 = arith.addf %176, %180 : vector<2x64xf32>
    %182 = math.tanh %181 : vector<2x64xf32>
    %cst_36 = arith.constant 1.000000e+00 : f32
    %183 = vector.broadcast %cst_36 : f32 to vector<2x64xf32>
    %184 = arith.subf %183, %175 : vector<2x64xf32>
    %185 = arith.mulf %184, %182 : vector<2x64xf32>
    %186 = arith.mulf %175, %163 : vector<2x64xf32>
    %187 = arith.addf %185, %186 : vector<2x64xf32>
    %188 = vector.extract_strided_slice %17 {offsets = [14, 0], sizes = [2, 192], strides = [1, 1]} : vector<16x192xf32> to vector<2x192xf32>
    %cst_37 = arith.constant dense<0.000000e+00> : vector<2x192xf32>
    %189 = tpu.matmul %187, %18, %cst_37 {dimension_numbers = #tpu.dot_dimension_numbers<[1], [0], [0], [1], [0, 0, 1, 1], [], []>} : vector<2x64xf32>, vector<64x192xf32>, vector<2x192xf32> -> vector<2x192xf32>
    %190 = vector.extract_strided_slice %188 {offsets = [0, 0], sizes = [2, 128], strides = [1, 1]} : vector<2x192xf32> to vector<2x128xf32>
    %191 = vector.extract_strided_slice %189 {offsets = [0, 0], sizes = [2, 128], strides = [1, 1]} : vector<2x192xf32> to vector<2x128xf32>
    %192 = arith.addf %190, %191 : vector<2x128xf32>
    %193 = arith.negf %192 : vector<2x128xf32>
    %194 = math.exp %193 : vector<2x128xf32>
    %cst_38 = arith.constant 1.000000e+00 : f32
    %195 = vector.broadcast %cst_38 : f32 to vector<2x128xf32>
    %196 = arith.addf %195, %194 : vector<2x128xf32>
    %197 = arith.divf %195, %196 : vector<2x128xf32>
    %198 = vector.extract_strided_slice %197 {offsets = [0, 0], sizes = [2, 64], strides = [1, 1]} : vector<2x128xf32> to vector<2x64xf32>
    %199 = vector.extract_strided_slice %197 {offsets = [0, 64], sizes = [2, 64], strides = [1, 1]} : vector<2x128xf32> to vector<2x64xf32>
    %200 = vector.extract_strided_slice %188 {offsets = [0, 128], sizes = [2, 64], strides = [1, 1]} : vector<2x192xf32> to vector<2x64xf32>
    %201 = vector.extract_strided_slice %189 {offsets = [0, 128], sizes = [2, 64], strides = [1, 1]} : vector<2x192xf32> to vector<2x64xf32>
    %202 = vector.broadcast %19 : vector<1x64xf32> to vector<2x64xf32>
    %203 = arith.addf %201, %202 : vector<2x64xf32>
    %204 = arith.mulf %198, %203 : vector<2x64xf32>
    %205 = arith.addf %200, %204 : vector<2x64xf32>
    %206 = math.tanh %205 : vector<2x64xf32>
    %cst_39 = arith.constant 1.000000e+00 : f32
    %207 = vector.broadcast %cst_39 : f32 to vector<2x64xf32>
    %208 = arith.subf %207, %199 : vector<2x64xf32>
    %209 = arith.mulf %208, %206 : vector<2x64xf32>
    %210 = arith.mulf %199, %187 : vector<2x64xf32>
    %211 = arith.addf %209, %210 : vector<2x64xf32>
    %212 = vector.extract_strided_slice %43 {offsets = [0, 0], sizes = [2, 32], strides = [1, 1]} : vector<2x64xf32> to vector<2x32xf32>
    %213 = vector.extract_strided_slice %67 {offsets = [0, 0], sizes = [2, 32], strides = [1, 1]} : vector<2x64xf32> to vector<2x32xf32>
    %214 = vector.extract_strided_slice %91 {offsets = [0, 0], sizes = [2, 32], strides = [1, 1]} : vector<2x64xf32> to vector<2x32xf32>
    %215 = vector.extract_strided_slice %115 {offsets = [0, 0], sizes = [2, 32], strides = [1, 1]} : vector<2x64xf32> to vector<2x32xf32>
    %216 = vector.extract_strided_slice %139 {offsets = [0, 0], sizes = [2, 32], strides = [1, 1]} : vector<2x64xf32> to vector<2x32xf32>
    %217 = vector.extract_strided_slice %163 {offsets = [0, 0], sizes = [2, 32], strides = [1, 1]} : vector<2x64xf32> to vector<2x32xf32>
    %218 = vector.extract_strided_slice %187 {offsets = [0, 0], sizes = [2, 32], strides = [1, 1]} : vector<2x64xf32> to vector<2x32xf32>
    %219 = vector.extract_strided_slice %211 {offsets = [0, 0], sizes = [2, 32], strides = [1, 1]} : vector<2x64xf32> to vector<2x32xf32>
    %220 = tpu.concatenate %212, %213, %214, %215, %216, %217, %218, %219 in 0 : vector<2x32xf32>, vector<2x32xf32>, vector<2x32xf32>, vector<2x32xf32>, vector<2x32xf32>, vector<2x32xf32>, vector<2x32xf32>, vector<2x32xf32> -> vector<16x32xf32>
    %221 = vector.extract_strided_slice %211 {offsets = [0, 32], sizes = [2, 32], strides = [1, 1]} : vector<2x64xf32> to vector<2x32xf32>
    %222 = vector.extract_strided_slice %187 {offsets = [0, 32], sizes = [2, 32], strides = [1, 1]} : vector<2x64xf32> to vector<2x32xf32>
    %223 = vector.extract_strided_slice %163 {offsets = [0, 32], sizes = [2, 32], strides = [1, 1]} : vector<2x64xf32> to vector<2x32xf32>
    %224 = vector.extract_strided_slice %139 {offsets = [0, 32], sizes = [2, 32], strides = [1, 1]} : vector<2x64xf32> to vector<2x32xf32>
    %225 = vector.extract_strided_slice %115 {offsets = [0, 32], sizes = [2, 32], strides = [1, 1]} : vector<2x64xf32> to vector<2x32xf32>
    %226 = vector.extract_strided_slice %91 {offsets = [0, 32], sizes = [2, 32], strides = [1, 1]} : vector<2x64xf32> to vector<2x32xf32>
    %227 = vector.extract_strided_slice %67 {offsets = [0, 32], sizes = [2, 32], strides = [1, 1]} : vector<2x64xf32> to vector<2x32xf32>
    %228 = vector.extract_strided_slice %43 {offsets = [0, 32], sizes = [2, 32], strides = [1, 1]} : vector<2x64xf32> to vector<2x32xf32>
    %229 = tpu.concatenate %221, %222, %223, %224, %225, %226, %227, %228 in 0 : vector<2x32xf32>, vector<2x32xf32>, vector<2x32xf32>, vector<2x32xf32>, vector<2x32xf32>, vector<2x32xf32>, vector<2x32xf32>, vector<2x32xf32> -> vector<16x32xf32>
    %c0_40 = arith.constant 0 : index
    %c0_41 = arith.constant 0 : index
    %230 = vector.load %arg8[%c0_40, %c0_41] : memref<32x12xf32, #tpu.memory_space<vmem>>, vector<32x12xf32>
    %cst_42 = arith.constant dense<0.000000e+00> : vector<16x12xf32>
    %231 = tpu.matmul %220, %230, %cst_42 {dimension_numbers = #tpu.dot_dimension_numbers<[1], [0], [0], [1], [0, 0, 1, 1], [], []>} : vector<16x32xf32>, vector<32x12xf32>, vector<16x12xf32> -> vector<16x12xf32>
    %c0_43 = arith.constant 0 : index
    %c0_44 = arith.constant 0 : index
    %232 = vector.load %arg9[%c0_43, %c0_44] : memref<32x12xf32, #tpu.memory_space<vmem>>, vector<32x12xf32>
    %cst_45 = arith.constant dense<0.000000e+00> : vector<16x12xf32>
    %233 = tpu.matmul %229, %232, %cst_45 {dimension_numbers = #tpu.dot_dimension_numbers<[1], [0], [0], [1], [0, 0, 1, 1], [], []>} : vector<16x32xf32>, vector<32x12xf32>, vector<16x12xf32> -> vector<16x12xf32>
    %234 = arith.addf %231, %233 : vector<16x12xf32>
    %c0_46 = arith.constant 0 : index
    %c0_47 = arith.constant 0 : index
    %235 = vector.load %arg10[%c0_46, %c0_47] : memref<1x12xf32, #tpu.memory_space<vmem>>, vector<1x12xf32>
    %236 = vector.broadcast %235 : vector<1x12xf32> to vector<16x12xf32>
    %237 = arith.addf %234, %236 : vector<16x12xf32>
    %c0_48 = arith.constant 0 : index
    %c0_49 = arith.constant 0 : index
    %238 = vector.load %arg11[%c0_48, %c0_49] : memref<16x12xf32, #tpu.memory_space<vmem>>, vector<16x12xf32>
    tpu.vector_store %arg11[%c0_48, %c0_49], %237 {strides = array<i32>} : memref<16x12xf32, #tpu.memory_space<vmem>>, vector<16x12xf32>,
    return
  }
}

</mosaic_0001>

<llo_original>
// kernel: tpu_custom_call.1
$region0: #{tpu_custom_call.1}
  #allocation0 [shape = 'u32[]', space=smem, size = 0x4, offset = 0x4, fixed_abs, tag = 'smem constant byte address 0x4 - core index']
  #allocation1 [shape = 'u32[144,128]{1,0:T(1,128)}', space=vmem, size = 0x12000, scoped, tag = 'internal scratch']
  %s0 = inlined_call_operand.vmem [shape: f32[16,16], index: 0, kind: input, shape index: {}]
  %s1 = inlined_call_operand.vmem [shape: f32[2,8], index: 1, kind: input, shape index: {}]
  %s2 = inlined_call_operand.vmem [shape: f32[8,64], index: 2, kind: input, shape index: {}]
  %s3 = inlined_call_operand.vmem [shape: f32[1,64], index: 3, kind: input, shape index: {}]
  %s4 = inlined_call_operand.vmem [shape: f32[16,192], index: 4, kind: input, shape index: {}]
  %s5 = inlined_call_operand.vmem [shape: f32[1,192], index: 5, kind: input, shape index: {}]
  %s6 = inlined_call_operand.hbm [shape: f32[64,192], index: 6, kind: input, shape index: {}]
  %s7 = inlined_call_operand.vmem [shape: f32[1,64], index: 7, kind: input, shape index: {}]
  %s8 = inlined_call_operand.vmem [shape: f32[32,12], index: 8, kind: input, shape index: {}]
  %s9 = inlined_call_operand.vmem [shape: f32[32,12], index: 9, kind: input, shape index: {}]
  %s10 = inlined_call_operand.vmem [shape: f32[1,12], index: 10, kind: input, shape index: {}]
  %s11 = inlined_call_operand.hbm [shape: f32[16,12], index: 11, kind: output, shape index: {}]
  %s12 = sld [smem:[#allocation0]]
  $region58: #{tpu_custom_call.1} parent=0
    _
  %s14 = ssub.s32 1, %s12
  %s15 = scalar_select 0, %s14, %s12
  $region1: #{tpu_custom_call.1} parent=0
    #allocation2 [shape = 'u8[65536]{0}', space=vmem, size = 0x10000, scoped, tag = 'input window, operand 6, single buffered']
    #allocation3 [shape = 's32[1]{0}', space=sflag, size = 0x4, scoped, tag = 'scoped memory for tpu_custom_call.1']
    #allocation4 [shape = 's32[1]{0}', space=sflag, size = 0x4, scoped, tag = 'scoped memory for tpu_custom_call.1']
    #allocation5 [shape = 'u8[8192]{0}', space=vmem, size = 0x2000, scoped, tag = 'output window, operand 0, single buffered']
    %16 = vsyncpa [#allocation3], 0
    %17 = vsyncpa [#allocation4], 0
    // Predicated region
    $region2: #{tpu_custom_call.1} parent=1 // pred_check
      _
    $region3: #{tpu_custom_call.1} parent=1 // pred_check_branch
      %19 = sbr.rel (0) target = $region5
    $region4: #{tpu_custom_call.1} parent=1 // pred_region
      _
    $region5: #{tpu_custom_call.1} parent=1 // pred_fallthru
      _
    // Predicated region
    $region6: #{tpu_custom_call.1} parent=1 // pred_check
      _
    $region7: #{tpu_custom_call.1} parent=1 // pred_check_branch
      %21 = sbr.rel (0) target = $region9
    $region8: #{tpu_custom_call.1} parent=1 // pred_region
      _
    $region9: #{tpu_custom_call.1} parent=1 // pred_fallthru
      _
    // Predicated region
    $region10: #{tpu_custom_call.1} parent=1 // pred_check
      _
    $region11: #{tpu_custom_call.1} parent=1 // pred_check_branch
      %23 = sbr.rel (0) target = $region13
    $region12: #{tpu_custom_call.1} parent=1 // pred_region
      _
    $region13: #{tpu_custom_call.1} parent=1 // pred_fallthru
      _
    // Predicated region
    $region14: #{tpu_custom_call.1} parent=1 // pred_check
      _
    $region15: #{tpu_custom_call.1} parent=1 // pred_check_branch
      %25 = sbr.rel (0) target = $region17
    $region16: #{tpu_custom_call.1} parent=1 // pred_region
      _
    $region17: #{tpu_custom_call.1} parent=1 // pred_fallthru
      _
    // Predicated region
    $region18: #{tpu_custom_call.1} parent=1 // pred_check
      _
    $region19: #{tpu_custom_call.1} parent=1 // pred_check_branch
      %27 = sbr.rel (0) target = $region21
    $region20: #{tpu_custom_call.1} parent=1 // pred_region
      _
    $region21: #{tpu_custom_call.1} parent=1 // pred_fallthru
      _
    // Predicated region
    $region22: #{tpu_custom_call.1} parent=1 // pred_check
      _
    $region23: #{tpu_custom_call.1} parent=1 // pred_check_branch
      %29 = sbr.rel (0) target = $region25
    $region24: #{tpu_custom_call.1} parent=1 // pred_region
      _
    $region25: #{tpu_custom_call.1} parent=1 // pred_fallthru
      _
    // Predicated region
    $region26: #{tpu_custom_call.1} parent=1 // pred_check
      _
    $region27: #{tpu_custom_call.1} parent=1 // pred_check_branch
      %31 = sbr.rel (0) target = $region29
    $region28: #{tpu_custom_call.1} parent=1 // pred_region
      %s33 = ssub.s32 2048, 2048
      %34 = vsyncadd [#allocation3], %s33
      %s35 = sshll.u32 [#allocation2], 4
      %s36 = int_to_ptr.vmem [resolvable:$true] %s35
      %41 = dma.hbm_to_vmem [thread:$0]  %s6, 2048, %s36, [#allocation3], 256, 256, 16
    $region29: #{tpu_custom_call.1} parent=1 // pred_fallthru
      _
    // Predicated region
    $region30: #{tpu_custom_call.1} parent=1 // pred_check
      _
    $region31: #{tpu_custom_call.1} parent=1 // pred_check_branch
      %43 = sbr.rel (0) target = $region33
    $region32: #{tpu_custom_call.1} parent=1 // pred_region
      _
    $region33: #{tpu_custom_call.1} parent=1 // pred_fallthru
      _
    // Predicated region
    $region34: #{tpu_custom_call.1} parent=1 // pred_check
      _
    $region35: #{tpu_custom_call.1} parent=1 // pred_check_branch
      %45 = sbr.rel (0) target = $region37
    $region36: #{tpu_custom_call.1} parent=1 // pred_region
      _
    $region37: #{tpu_custom_call.1} parent=1 // pred_fallthru
      _
    // Predicated region
    $region38: #{tpu_custom_call.1} parent=1 // pred_check
      _
    $region39: #{tpu_custom_call.1} parent=1 // pred_check_branch
      %47 = sbr.rel (0) target = $region41
    $region40: #{tpu_custom_call.1} parent=1 // pred_region
      _
    $region41: #{tpu_custom_call.1} parent=1 // pred_fallthru
      _
    // Predicated region
    $region42: #{tpu_custom_call.1} parent=1 // pred_check
      _
    $region43: #{tpu_custom_call.1} parent=1 // pred_check_branch
      %49 = sbr.rel (0) target = $region45
    $region44: #{tpu_custom_call.1} parent=1 // pred_region
      _
    $region45: #{tpu_custom_call.1} parent=1 // pred_fallthru
      _
    // Predicated region
    $region46: #{tpu_custom_call.1} parent=1 // pred_check
      _
    $region47: #{tpu_custom_call.1} parent=1 // pred_check_branch
      %51 = sbr.rel (0) target = $region49
    $region48: #{tpu_custom_call.1} parent=1 // pred_region
      %52 = dma.done [#allocation3], 2048
    $region49: #{tpu_custom_call.1} parent=1 // pred_fallthru
      _
    %v53 = vld [vmem:[%s1] sm:$0x3]
    %v54 = vld [vmem:[%s2] sm:$0xff]
    %v55 = vld [vmem:[%s3] sm:$0x1]
    %v57 = vlaneseq
    %v58 = vshrl.u32 %v57, 7
    %v59 = vsub.s32 0, %v58
    %v60 = vrot.slane %v55, %v59
    %vm62 = vcmask 64512
    %v64 = vsel %vm62, %v53, 0
    %66 = vmatprep.subr.mxu0 0.0
    %67 = vmatpush1.msra.mxu0 %v54
    %68 = vmatprep.subr.mxu0 0.0
    %69 = vmatpush1.msra.mxu0 0.0
    %70 = vmatprep.subr.mxu0 0.0
    %71 = vmatpush1.msra.mxu0 0.0
    %72 = vmatprep.subr.mxu0 0.0
    %73 = vmatpush1.msra.mxu0 0.0
    %74 = vmatprep.subr.mxu0 0.0
    %75 = vmatpush1.msra.mxu0 0.0
    %76 = vmatprep.subr.mxu0 0.0
    %77 = vmatpush1.msra.mxu0 0.0
    %78 = vmatprep.subr.mxu0 0.0
    %79 = vmatpush1.msra.mxu0 0.0
    %80 = vmatprep.subr.mxu0 0.0
    %81 = vmatpush1.msra.mxu0 0.0
    %82 = vmatprep.subr.mxu0 0.0
    %83 = vmatpush1.msra.mxu0 0.0
    %84 = vmatprep.subr.mxu0 0.0
    %85 = vmatpush1.msra.mxu0 0.0
    %86 = vmatprep.subr.mxu0 0.0
    %87 = vmatpush1.msra.mxu0 0.0
    %88 = vmatprep.subr.mxu0 0.0
    %89 = vmatpush1.msra.mxu0 0.0
    %90 = vmatprep.subr.mxu0 0.0
    %91 = vmatpush1.msra.mxu0 0.0
    %92 = vmatprep.subr.mxu0 0.0
    %93 = vmatpush1.msra.mxu0 0.0
    %94 = vmatprep.subr.mxu0 0.0
    %95 = vmatpush1.msra.mxu0 0.0
    %96 = vmatprep.subr.mxu0 0.0
    %97 = vmatpush1.msra.mxu0 0.0
    %98 = vmatprep.subr.mxu0 0.0
    %99 = vmatpush1.msra.mxu0 0.0
    %100 = vmatprep.subr.mxu0 0.0
    %101 = vmatpush1.msra.mxu0 0.0
    %102 = vmatprep.subr.mxu0 0.0
    %103 = vmatpush1.msra.mxu0 0.0
    %104 = vmatprep.subr.mxu0 0.0
    %105 = vmatpush1.msra.mxu0 0.0
    %106 = vmatprep.subr.mxu0 0.0
    %107 = vmatpush1.msra.mxu0 0.0
    %108 = vmatprep.subr.mxu0 0.0
    %109 = vmatpush1.msra.mxu0 0.0
    %110 = vmatprep.subr.mxu0 0.0
    %111 = vmatpush1.msra.mxu0 0.0
    %112 = vmatprep.subr.mxu0 0.0
    %113 = vmatpush1.msra.mxu0 0.0
    %114 = vmatprep.subr.mxu0 0.0
    %115 = vmatpush1.msra.mxu0 0.0
    %116 = vmatprep.subr.mxu0 0.0
    %117 = vmatpush1.msra.mxu0 0.0
    %118 = vmatprep.subr.mxu0 0.0
    %119 = vmatpush1.msra.mxu0 0.0
    %120 = vmatprep.subr.mxu0 0.0
    %121 = vmatpush1.msra.mxu0 0.0
    %122 = vmatprep.subr.mxu0 0.0
    %123 = vmatpush1.msra.mxu0 0.0
    %124 = vmatprep.subr.mxu0 0.0
    %125 = vmatpush1.msra.mxu0 0.0
    %126 = vmatprep.subr.mxu0 0.0
    %127 = vmatpush1.msra.mxu0 0.0
    %128 = vmatprep.subr.mxu0 0.0
    %129 = vmatpush1.msra.mxu0 0.0
    %130 = vmatprep.mubr.f32.mxu0 0.0
    %131 = vmatmul.mubr.f32.gmra.mrb[0].mxu0 %v64
    %v132 = vpop.f32.mrb[0].mxu0
    %v133 = vadd.f32 %v60, %v132
    %v134 = vpop.f32.mrb[0].mxu0
    %135 = vdwg.mxu0
    %137 = vrot.lane.b32.xlu0 %v133, 96
    %v138 = vpop.permute.xlu0 %137
    %v140 = vcombine.low %v133, %v138
    %v142 = vunpack.c.l.s4 1934713408
    %v143 = vunpack.c.0.s8 %v142
    %v144 = vlaneseq
    %v145 = vshrl.u32 %v144, 7
    %v146 = vsub.s32 %v143, %v145
    %v147 = vrot.slane %v140, %v146
    %v148 = vcombine.high %v147, 0.0
    %150 = vrot.lane.b32.xlu0 %v148, 32
    %v151 = vpop.permute.xlu0 %150
    %vm153 = vcmask 261120
    %v154 = vsel %vm153, %v147, %v151
    %v155 = vld [vmem:[%s0] sm:$0xff]
    %v156 = vld [vmem:[%s0 + $0x8] sm:$0xff]
    %v157 = vld [vmem:[%s4] sm:$0xff]
    %v158 = vld [vmem:[%s4 + $0x8] sm:$0xff]
    %v159 = vld [vmem:[%s4 + $0x10] sm:$0xff]
    %v160 = vld [vmem:[%s4 + $0x18] sm:$0xff]
    %v161 = vld [vmem:[%s5] sm:$0x3]
    %v163 = vlaneseq
    %v164 = vshrl.u32 %v163, 7
    %v165 = vsub.s32 0, %v164
    %v166 = vrot.slane %v161, %v165
    %v167 = vlaneseq
    %v168 = vshrl.u32 %v167, 7
    %v169 = vsub.s32 1, %v168
    %v170 = vrot.slane %v161, %v169
    %vm173 = vcmask 130048
    %v175 = vsel %vm173, %v155, 0
    %v178 = vsel %vm173, %v156, 0
    %180 = vmatprep.subr.mxu0 %v158
    %181 = vmatpush1.msra.mxu0 %v157
    %182 = vmatprep.subr.mxu0 %v160
    %183 = vmatpush1.msra.mxu0 %v159
    %184 = vmatprep.subr.mxu0 0.0
    %185 = vmatpush1.msra.mxu0 0.0
    %186 = vmatprep.subr.mxu0 0.0
    %187 = vmatpush1.msra.mxu0 0.0
    %188 = vmatprep.subr.mxu0 0.0
    %189 = vmatpush1.msra.mxu0 0.0
    %190 = vmatprep.subr.mxu0 0.0
    %191 = vmatpush1.msra.mxu0 0.0
    %192 = vmatprep.subr.mxu0 0.0
    %193 = vmatpush1.msra.mxu0 0.0
    %194 = vmatprep.subr.mxu0 0.0
    %195 = vmatpush1.msra.mxu0 0.0
    %196 = vmatprep.subr.mxu0 0.0
    %197 = vmatpush1.msra.mxu0 0.0
    %198 = vmatprep.subr.mxu0 0.0
    %199 = vmatpush1.msra.mxu0 0.0
    %200 = vmatprep.subr.mxu0 0.0
    %201 = vmatpush1.msra.mxu0 0.0
    %202 = vmatprep.subr.mxu0 0.0
    %203 = vmatpush1.msra.mxu0 0.0
    %204 = vmatprep.subr.mxu0 0.0
    %205 = vmatpush1.msra.mxu0 0.0
    %206 = vmatprep.subr.mxu0 0.0
    %207 = vmatpush1.msra.mxu0 0.0
    %208 = vmatprep.subr.mxu0 0.0
    %209 = vmatpush1.msra.mxu0 0.0
    %210 = vmatprep.subr.mxu0 0.0
    %211 = vmatpush1.msra.mxu0 0.0
    %212 = vmatprep.subr.mxu0 0.0
    %213 = vmatpush1.msra.mxu0 0.0
    %214 = vmatprep.subr.mxu0 0.0
    %215 = vmatpush1.msra.mxu0 0.0
    %216 = vmatprep.subr.mxu0 0.0
    %217 = vmatpush1.msra.mxu0 0.0
    %218 = vmatprep.subr.mxu0 0.0
    %219 = vmatpush1.msra.mxu0 0.0
    %220 = vmatprep.subr.mxu0 0.0
    %221 = vmatpush1.msra.mxu0 0.0
    %222 = vmatprep.subr.mxu0 0.0
    %223 = vmatpush1.msra.mxu0 0.0
    %224 = vmatprep.subr.mxu0 0.0
    %225 = vmatpush1.msra.mxu0 0.0
    %226 = vmatprep.subr.mxu0 0.0
    %227 = vmatpush1.msra.mxu0 0.0
    %228 = vmatprep.subr.mxu0 0.0
    %229 = vmatpush1.msra.mxu0 0.0
    %230 = vmatprep.subr.mxu0 0.0
    %231 = vmatpush1.msra.mxu0 0.0
    %232 = vmatprep.subr.mxu0 0.0
    %233 = vmatpush1.msra.mxu0 0.0
    %234 = vmatprep.subr.mxu0 0.0
    %235 = vmatpush1.msra.mxu0 0.0
    %236 = vmatprep.subr.mxu0 0.0
    %237 = vmatpush1.msra.mxu0 0.0
    %238 = vmatprep.subr.mxu0 0.0
    %239 = vmatpush1.msra.mxu0 0.0
    %240 = vmatprep.subr.mxu0 0.0
    %241 = vmatpush1.msra.mxu0 0.0
    %242 = vmatprep.subr.mxu0 0.0
    %243 = vmatpush1.msra.mxu0 0.0
    %244 = vmatprep.mubr.f32.mxu0 0.0
    %245 = vmatmul.mubr.f32.gmra.mrb[0].mxu0 %v175
    %v246 = vpop.f32.mrb[0].mxu0
    %v247 = vadd.f32 %v166, %v246
    %v248 = vpop.f32.mrb[0].mxu0
    %v249 = vadd.f32 %v170, %v248
    %250 = vmatprep.mubr.f32.mxu0 0.0
    %251 = vmatmul.mubr.f32.gmra.mrb[0].mxu0 %v178
    %v252 = vpop.f32.mrb[0].mxu0
    %v253 = vadd.f32 %v166, %v252
    %v254 = vpop.f32.mrb[0].mxu0
    %v255 = vadd.f32 %v170, %v254
    %256 = vdwg.mxu0
    %v257 = vld [vmem:[#allocation2] sm:$0xff]
    %v258 = vld [vmem:[#allocation2 + $0x8] sm:$0xff]
    %v259 = vld [vmem:[#allocation2 + $0x10] sm:$0xff]
    %v260 = vld [vmem:[#allocation2 + $0x18] sm:$0xff]
    %v261 = vld [vmem:[#allocation2 + $0x20] sm:$0xff]
    %v262 = vld [vmem:[#allocation2 + $0x28] sm:$0xff]
    %v263 = vld [vmem:[#allocation2 + $0x30] sm:$0xff]
    %v264 = vld [vmem:[#allocation2 + $0x38] sm:$0xff]
    %v265 = vld [vmem:[#allocation2 + $0x40] sm:$0xff]
    %v266 = vld [vmem:[#allocation2 + $0x48] sm:$0xff]
    %v267 = vld [vmem:[#allocation2 + $0x50] sm:$0xff]
    %v268 = vld [vmem:[#allocation2 + $0x58] sm:$0xff]
    %v269 = vld [vmem:[#allocation2 + $0x60] sm:$0xff]
    %v270 = vld [vmem:[#allocation2 + $0x68] sm:$0xff]
    %v271 = vld [vmem:[#allocation2 + $0x70] sm:$0xff]
    %v272 = vld [vmem:[#allocation2 + $0x78] sm:$0xff]
    %v273 = vld [vmem:[%s7] sm:$0x1]
    %vm274 = vcmask 523264
    %v276 = vsel %vm274, %v154, 0
    %278 = vmatprep.subr.mxu0 %v258
    %279 = vmatpush1.msra.mxu0 %v257
    %280 = vmatprep.subr.mxu0 %v260
    %281 = vmatpush1.msra.mxu0 %v259
    %282 = vmatprep.subr.mxu0 %v262
    %283 = vmatpush1.msra.mxu0 %v261
    %284 = vmatprep.subr.mxu0 %v264
    %285 = vmatpush1.msra.mxu0 %v263
    %286 = vmatprep.subr.mxu0 %v266
    %287 = vmatpush1.msra.mxu0 %v265
    %288 = vmatprep.subr.mxu0 %v268
    %289 = vmatpush1.msra.mxu0 %v267
    %290 = vmatprep.subr.mxu0 %v270
    %291 = vmatpush1.msra.mxu0 %v269
    %292 = vmatprep.subr.mxu0 %v272
    %293 = vmatpush1.msra.mxu0 %v271
    %294 = vmatprep.subr.mxu0 0.0
    %295 = vmatpush1.msra.mxu0 0.0
    %296 = vmatprep.subr.mxu0 0.0
    %297 = vmatpush1.msra.mxu0 0.0
    %298 = vmatprep.subr.mxu0 0.0
    %299 = vmatpush1.msra.mxu0 0.0
    %300 = vmatprep.subr.mxu0 0.0
    %301 = vmatpush1.msra.mxu0 0.0
    %302 = vmatprep.subr.mxu0 0.0
    %303 = vmatpush1.msra.mxu0 0.0
    %304 = vmatprep.subr.mxu0 0.0
    %305 = vmatpush1.msra.mxu0 0.0
    %306 = vmatprep.subr.mxu0 0.0
    %307 = vmatpush1.msra.mxu0 0.0
    %308 = vmatprep.subr.mxu0 0.0
    %309 = vmatpush1.msra.mxu0 0.0
    %310 = vmatprep.subr.mxu0 0.0
    %311 = vmatpush1.msra.mxu0 0.0
    %312 = vmatprep.subr.mxu0 0.0
    %313 = vmatpush1.msra.mxu0 0.0
    %314 = vmatprep.subr.mxu0 0.0
    %315 = vmatpush1.msra.mxu0 0.0
    %316 = vmatprep.subr.mxu0 0.0
    %317 = vmatpush1.msra.mxu0 0.0
    %318 = vmatprep.subr.mxu0 0.0
    %319 = vmatpush1.msra.mxu0 0.0
    %320 = vmatprep.subr.mxu0 0.0
    %321 = vmatpush1.msra.mxu0 0.0
    %322 = vmatprep.subr.mxu0 0.0
    %323 = vmatpush1.msra.mxu0 0.0
    %324 = vmatprep.subr.mxu0 0.0
    %325 = vmatpush1.msra.mxu0 0.0
    %326 = vmatprep.subr.mxu0 0.0
    %327 = vmatpush1.msra.mxu0 0.0
    %328 = vmatprep.subr.mxu0 0.0
    %329 = vmatpush1.msra.mxu0 0.0
    %330 = vmatprep.subr.mxu0 0.0
    %331 = vmatpush1.msra.mxu0 0.0
    %332 = vmatprep.subr.mxu0 0.0
    %333 = vmatpush1.msra.mxu0 0.0
    %334 = vmatprep.subr.mxu0 0.0
    %335 = vmatpush1.msra.mxu0 0.0
    %336 = vmatprep.subr.mxu0 0.0
    %337 = vmatpush1.msra.mxu0 0.0
    %338 = vmatprep.subr.mxu0 0.0
    %339 = vmatpush1.msra.mxu0 0.0
    %340 = vmatprep.subr.mxu0 0.0
    %341 = vmatpush1.msra.mxu0 0.0
    %342 = vmatprep.mubr.f32.mxu0 0.0
    %343 = vmatmul.mubr.f32.gmra.mrb[0].mxu0 %v276
    %v344 = vpop.f32.mrb[0].mxu0
    %v345 = vadd.f32 0.0, %v344
    %v346 = vpop.f32.mrb[0].mxu0
    %v347 = vadd.f32 0.0, %v346
    %348 = vdwg.mxu0
    %v349 = vadd.f32 %v247, %v345
    %v350 = vxor.u32 %v349, 2147483648
    %v351 = vmul.f32 %v350, 1.442695
    %v352 = vpow.pop %v351
    %v353 = vadd.f32 %v352, 1.0
    %v354 = vrcp.pop %v353
    %v355 = vmul.f32 1.0, %v354
    %v357 = vlaneseq
    %v358 = vshrl.u32 %v357, 7
    %v359 = vsub.s32 0, %v358
    %v360 = vrot.slane %v273, %v359
    %v362 = vadd.f32 %v347, %v360
    %v363 = vmul.f32 %v355, %v362
    %v364 = vadd.f32 %v249, %v363
    %v365 = vtanh.pop %v364
    %v366 = vsub.f32 1.0, %v355
    %368 = vrot.lane.b32.xlu0 %v365, 64
    %v369 = vpop.permute.xlu0 %368
    %v371 = vmul.f32 %v366, %v369
    %372 = vrot.lane.b32.xlu0 %v154, 64
    %v373 = vpop.permute.xlu0 %372
    %v375 = vmul.f32 %v355, %v373
    %v376 = vadd.f32 %v371, %v375
    %378 = vrot.lane.b32.xlu0 %v376, 64
    %v379 = vpop.permute.xlu0 %378
    %v380 = vsel %vm274, %v379, 0
    %382 = vmatprep.subr.mxu0 %v258
    %383 = vmatpush1.msra.mxu0 %v257
    %384 = vmatprep.subr.mxu0 %v260
    %385 = vmatpush1.msra.mxu0 %v259
    %386 = vmatprep.subr.mxu0 %v262
    %387 = vmatpush1.msra.mxu0 %v261
    %388 = vmatprep.subr.mxu0 %v264
    %389 = vmatpush1.msra.mxu0 %v263
    %390 = vmatprep.subr.mxu0 %v266
    %391 = vmatpush1.msra.mxu0 %v265
    %392 = vmatprep.subr.mxu0 %v268
    %393 = vmatpush1.msra.mxu0 %v267
    %394 = vmatprep.subr.mxu0 %v270
    %395 = vmatpush1.msra.mxu0 %v269
    %396 = vmatprep.subr.mxu0 %v272
    %397 = vmatpush1.msra.mxu0 %v271
    %398 = vmatprep.subr.mxu0 0.0
    %399 = vmatpush1.msra.mxu0 0.0
    %400 = vmatprep.subr.mxu0 0.0
    %401 = vmatpush1.msra.mxu0 0.0
    %402 = vmatprep.subr.mxu0 0.0
    %403 = vmatpush1.msra.mxu0 0.0
    %404 = vmatprep.subr.mxu0 0.0
    %405 = vmatpush1.msra.mxu0 0.0
    %406 = vmatprep.subr.mxu0 0.0
    %407 = vmatpush1.msra.mxu0 0.0
    %408 = vmatprep.subr.mxu0 0.0
    %409 = vmatpush1.msra.mxu0 0.0
    %410 = vmatprep.subr.mxu0 0.0
    %411 = vmatpush1.msra.mxu0 0.0
    %412 = vmatprep.subr.mxu0 0.0
    %413 = vmatpush1.msra.mxu0 0.0
    %414 = vmatprep.subr.mxu0 0.0
    %415 = vmatpush1.msra.mxu0 0.0
    %416 = vmatprep.subr.mxu0 0.0
    %417 = vmatpush1.msra.mxu0 0.0
    %418 = vmatprep.subr.mxu0 0.0
    %419 = vmatpush1.msra.mxu0 0.0
    %420 = vmatprep.subr.mxu0 0.0
    %421 = vmatpush1.msra.mxu0 0.0
    %422 = vmatprep.subr.mxu0 0.0
    %423 = vmatpush1.msra.mxu0 0.0
    %424 = vmatprep.subr.mxu0 0.0
    %425 = vmatpush1.msra.mxu0 0.0
    %426 = vmatprep.subr.mxu0 0.0
    %427 = vmatpush1.msra.mxu0 0.0
    %428 = vmatprep.subr.mxu0 0.0
    %429 = vmatpush1.msra.mxu0 0.0
    %430 = vmatprep.subr.mxu0 0.0
    %431 = vmatpush1.msra.mxu0 0.0
    %432 = vmatprep.subr.mxu0 0.0
    %433 = vmatpush1.msra.mxu0 0.0
    %434 = vmatprep.subr.mxu0 0.0
    %435 = vmatpush1.msra.mxu0 0.0
    %436 = vmatprep.subr.mxu0 0.0
    %437 = vmatpush1.msra.mxu0 0.0
    %438 = vmatprep.subr.mxu0 0.0
    %439 = vmatpush1.msra.mxu0 0.0
    %440 = vmatprep.subr.mxu0 0.0
    %441 = vmatpush1.msra.mxu0 0.0
    %442 = vmatprep.subr.mxu0 0.0
    %443 = vmatpush1.msra.mxu0 0.0
    %444 = vmatprep.subr.mxu0 0.0
    %445 = vmatpush1.msra.mxu0 0.0
    %446 = vmatprep.mubr.f32.mxu0 0.0
    %447 = vmatmul.mubr.f32.gmra.mrb[0].mxu0 %v380
    %v448 = vpop.f32.mrb[0].mxu0
    %v449 = vadd.f32 0.0, %v448
    %v450 = vpop.f32.mrb[0].mxu0
    %v451 = vadd.f32 0.0, %v450
    %452 = vdwg.mxu0
    %v454 = vrot.slane %v449, 6
    %v456 = vadd.f32 %v247, %v454
    %v457 = vxor.u32 %v456, 2147483648
    %v458 = vmul.f32 %v457, 1.442695
    %v459 = vpow.pop %v458
    %v460 = vadd.f32 %v459, 1.0
    %v461 = vrcp.pop %v460
    %v462 = vmul.f32 1.0, %v461
    %v463 = vadd.f32 %v451, %v360
    %v465 = vrot.slane %v463, 6
    %v467 = vmul.f32 %v462, %v465
    %v468 = vadd.f32 %v249, %v467
    %v469 = vtanh.pop %v468
    %v470 = vsub.f32 1.0, %v462
    %472 = vrot.lane.b32.xlu0 %v469, 64
    %v473 = vpop.permute.xlu0 %472
    %v475 = vmul.f32 %v470, %v473
    %v476 = vrot.slane %v376, 6
    %v478 = vmul.f32 %v462, %v476
    %v479 = vadd.f32 %v475, %v478
    %v481 = vrot.slane %v479, 2
    %482 = vrot.lane.b32.xlu0 %v481, 64
    %v483 = vpop.permute.xlu0 %482
    %v484 = vsel %vm274, %v483, 0
    %486 = vmatprep.subr.mxu0 %v258
    %487 = vmatpush1.msra.mxu0 %v257
    %488 = vmatprep.subr.mxu0 %v260
    %489 = vmatpush1.msra.mxu0 %v259
    %490 = vmatprep.subr.mxu0 %v262
    %491 = vmatpush1.msra.mxu0 %v261
    %492 = vmatprep.subr.mxu0 %v264
    %493 = vmatpush1.msra.mxu0 %v263
    %494 = vmatprep.subr.mxu0 %v266
    %495 = vmatpush1.msra.mxu0 %v265
    %496 = vmatprep.subr.mxu0 %v268
    %497 = vmatpush1.msra.mxu0 %v267
    %498 = vmatprep.subr.mxu0 %v270
    %499 = vmatpush1.msra.mxu0 %v269
    %500 = vmatprep.subr.mxu0 %v272
    %501 = vmatpush1.msra.mxu0 %v271
    %502 = vmatprep.subr.mxu0 0.0
    %503 = vmatpush1.msra.mxu0 0.0
    %504 = vmatprep.subr.mxu0 0.0
    %505 = vmatpush1.msra.mxu0 0.0
    %506 = vmatprep.subr.mxu0 0.0
    %507 = vmatpush1.msra.mxu0 0.0
    %508 = vmatprep.subr.mxu0 0.0
    %509 = vmatpush1.msra.mxu0 0.0
    %510 = vmatprep.subr.mxu0 0.0
    %511 = vmatpush1.msra.mxu0 0.0
    %512 = vmatprep.subr.mxu0 0.0
    %513 = vmatpush1.msra.mxu0 0.0
    %514 = vmatprep.subr.mxu0 0.0
    %515 = vmatpush1.msra.mxu0 0.0
    %516 = vmatprep.subr.mxu0 0.0
    %517 = vmatpush1.msra.mxu0 0.0
    %518 = vmatprep.subr.mxu0 0.0
    %519 = vmatpush1.msra.mxu0 0.0
    %520 = vmatprep.subr.mxu0 0.0
    %521 = vmatpush1.msra.mxu0 0.0
    %522 = vmatprep.subr.mxu0 0.0
    %523 = vmatpush1.msra.mxu0 0.0
    %524 = vmatprep.subr.mxu0 0.0
    %525 = vmatpush1.msra.mxu0 0.0
    %526 = vmatprep.subr.mxu0 0.0
    %527 = vmatpush1.msra.mxu0 0.0
    %528 = vmatprep.subr.mxu0 0.0
    %529 = vmatpush1.msra.mxu0 0.0
    %530 = vmatprep.subr.mxu0 0.0
    %531 = vmatpush1.msra.mxu0 0.0
    %532 = vmatprep.subr.mxu0 0.0
    %533 = vmatpush1.msra.mxu0 0.0
    %534 = vmatprep.subr.mxu0 0.0
    %535 = vmatpush1.msra.mxu0 0.0
    %536 = vmatprep.subr.mxu0 0.0
    %537 = vmatpush1.msra.mxu0 0.0
    %538 = vmatprep.subr.mxu0 0.0
    %539 = vmatpush1.msra.mxu0 0.0
    %540 = vmatprep.subr.mxu0 0.0
    %541 = vmatpush1.msra.mxu0 0.0
    %542 = vmatprep.subr.mxu0 0.0
    %543 = vmatpush1.msra.mxu0 0.0
    %544 = vmatprep.subr.mxu0 0.0
    %545 = vmatpush1.msra.mxu0 0.0
    %546 = vmatprep.subr.mxu0 0.0
    %547 = vmatpush1.msra.mxu0 0.0
    %548 = vmatprep.subr.mxu0 0.0
    %549 = vmatpush1.msra.mxu0 0.0
    %550 = vmatprep.mubr.f32.mxu0 0.0
    %551 = vmatmul.mubr.f32.gmra.mrb[0].mxu0 %v484
    %v552 = vpop.f32.mrb[0].mxu0
    %v553 = vadd.f32 0.0, %v552
    %v554 = vpop.f32.mrb[0].mxu0
    %v555 = vadd.f32 0.0, %v554
    %556 = vdwg.mxu0
    %v558 = vrot.slane %v553, 4
    %v560 = vadd.f32 %v247, %v558
    %v561 = vxor.u32 %v560, 2147483648
    %v562 = vmul.f32 %v561, 1.442695
    %v563 = vpow.pop %v562
    %v564 = vadd.f32 %v563, 1.0
    %v565 = vrcp.pop %v564
    %v566 = vmul.f32 1.0, %v565
    %v567 = vadd.f32 %v555, %v360
    %v569 = vrot.slane %v567, 4
    %v571 = vmul.f32 %v566, %v569
    %v572 = vadd.f32 %v249, %v571
    %v573 = vtanh.pop %v572
    %v574 = vsub.f32 1.0, %v566
    %576 = vrot.lane.b32.xlu0 %v573, 64
    %v577 = vpop.permute.xlu0 %576
    %v579 = vmul.f32 %v574, %v577
    %v580 = vrot.slane %v479, 6
    %v582 = vmul.f32 %v566, %v580
    %v583 = vadd.f32 %v579, %v582
    %v585 = vrot.slane %v583, 4
    %586 = vrot.lane.b32.xlu0 %v585, 64
    %v587 = vpop.permute.xlu0 %586
    %v588 = vsel %vm274, %v587, 0
    %590 = vmatprep.subr.mxu0 %v258
    %591 = vmatpush1.msra.mxu0 %v257
    %592 = vmatprep.subr.mxu0 %v260
    %593 = vmatpush1.msra.mxu0 %v259
    %594 = vmatprep.subr.mxu0 %v262
    %595 = vmatpush1.msra.mxu0 %v261
    %596 = vmatprep.subr.mxu0 %v264
    %597 = vmatpush1.msra.mxu0 %v263
    %598 = vmatprep.subr.mxu0 %v266
    %599 = vmatpush1.msra.mxu0 %v265
    %600 = vmatprep.subr.mxu0 %v268
    %601 = vmatpush1.msra.mxu0 %v267
    %602 = vmatprep.subr.mxu0 %v270
    %603 = vmatpush1.msra.mxu0 %v269
    %604 = vmatprep.subr.mxu0 %v272
    %605 = vmatpush1.msra.mxu0 %v271
    %606 = vmatprep.subr.mxu0 0.0
    %607 = vmatpush1.msra.mxu0 0.0
    %608 = vmatprep.subr.mxu0 0.0
    %609 = vmatpush1.msra.mxu0 0.0
    %610 = vmatprep.subr.mxu0 0.0
    %611 = vmatpush1.msra.mxu0 0.0
    %612 = vmatprep.subr.mxu0 0.0
    %613 = vmatpush1.msra.mxu0 0.0
    %614 = vmatprep.subr.mxu0 0.0
    %615 = vmatpush1.msra.mxu0 0.0
    %616 = vmatprep.subr.mxu0 0.0
    %617 = vmatpush1.msra.mxu0 0.0
    %618 = vmatprep.subr.mxu0 0.0
    %619 = vmatpush1.msra.mxu0 0.0
    %620 = vmatprep.subr.mxu0 0.0
    %621 = vmatpush1.msra.mxu0 0.0
    %622 = vmatprep.subr.mxu0 0.0
    %623 = vmatpush1.msra.mxu0 0.0
    %624 = vmatprep.subr.mxu0 0.0
    %625 = vmatpush1.msra.mxu0 0.0
    %626 = vmatprep.subr.mxu0 0.0
    %627 = vmatpush1.msra.mxu0 0.0
    %628 = vmatprep.subr.mxu0 0.0
    %629 = vmatpush1.msra.mxu0 0.0
    %630 = vmatprep.subr.mxu0 0.0
    %631 = vmatpush1.msra.mxu0 0.0
    %632 = vmatprep.subr.mxu0 0.0
    %633 = vmatpush1.msra.mxu0 0.0
    %634 = vmatprep.subr.mxu0 0.0
    %635 = vmatpush1.msra.mxu0 0.0
    %636 = vmatprep.subr.mxu0 0.0
    %637 = vmatpush1.msra.mxu0 0.0
    %638 = vmatprep.subr.mxu0 0.0
    %639 = vmatpush1.msra.mxu0 0.0
    %640 = vmatprep.subr.mxu0 0.0
    %641 = vmatpush1.msra.mxu0 0.0
    %642 = vmatprep.subr.mxu0 0.0
    %643 = vmatpush1.msra.mxu0 0.0
    %644 = vmatprep.subr.mxu0 0.0
    %645 = vmatpush1.msra.mxu0 0.0
    %646 = vmatprep.subr.mxu0 0.0
    %647 = vmatpush1.msra.mxu0 0.0
    %648 = vmatprep.subr.mxu0 0.0
    %649 = vmatpush1.msra.mxu0 0.0
    %650 = vmatprep.subr.mxu0 0.0
    %651 = vmatpush1.msra.mxu0 0.0
    %652 = vmatprep.subr.mxu0 0.0
    %653 = vmatpush1.msra.mxu0 0.0
    %654 = vmatprep.mubr.f32.mxu0 0.0
    %655 = vmatmul.mubr.f32.gmra.mrb[0].mxu0 %v588
    %v656 = vpop.f32.mrb[0].mxu0
    %v657 = vadd.f32 0.0, %v656
    %v658 = vpop.f32.mrb[0].mxu0
    %v659 = vadd.f32 0.0, %v658
    %660 = vdwg.mxu0
    %v662 = vrot.slane %v657, 2
    %v664 = vadd.f32 %v247, %v662
    %v665 = vxor.u32 %v664, 2147483648
    %v666 = vmul.f32 %v665, 1.442695
    %v667 = vpow.pop %v666
    %v668 = vadd.f32 %v667, 1.0
    %v669 = vrcp.pop %v668
    %v670 = vmul.f32 1.0, %v669
    %v671 = vadd.f32 %v659, %v360
    %v673 = vrot.slane %v671, 2
    %v675 = vmul.f32 %v670, %v673
    %v676 = vadd.f32 %v249, %v675
    %v677 = vtanh.pop %v676
    %v678 = vsub.f32 1.0, %v670
    %680 = vrot.lane.b32.xlu0 %v677, 64
    %v681 = vpop.permute.xlu0 %680
    %v683 = vmul.f32 %v678, %v681
    %v684 = vrot.slane %v583, 6
    %v686 = vmul.f32 %v670, %v684
    %v687 = vadd.f32 %v683, %v686
    %v689 = vrot.slane %v687, 6
    %690 = vrot.lane.b32.xlu0 %v689, 64
    %v691 = vpop.permute.xlu0 %690
    %v692 = vsel %vm274, %v691, 0
    %694 = vmatprep.subr.mxu0 %v258
    %695 = vmatpush1.msra.mxu0 %v257
    %696 = vmatprep.subr.mxu0 %v260
    %697 = vmatpush1.msra.mxu0 %v259
    %698 = vmatprep.subr.mxu0 %v262
    %699 = vmatpush1.msra.mxu0 %v261
    %700 = vmatprep.subr.mxu0 %v264
    %701 = vmatpush1.msra.mxu0 %v263
    %702 = vmatprep.subr.mxu0 %v266
    %703 = vmatpush1.msra.mxu0 %v265
    %704 = vmatprep.subr.mxu0 %v268
    %705 = vmatpush1.msra.mxu0 %v267
    %706 = vmatprep.subr.mxu0 %v270
    %707 = vmatpush1.msra.mxu0 %v269
    %708 = vmatprep.subr.mxu0 %v272
    %709 = vmatpush1.msra.mxu0 %v271
    %710 = vmatprep.subr.mxu0 0.0
    %711 = vmatpush1.msra.mxu0 0.0
    %712 = vmatprep.subr.mxu0 0.0
    %713 = vmatpush1.msra.mxu0 0.0
    %714 = vmatprep.subr.mxu0 0.0
    %715 = vmatpush1.msra.mxu0 0.0
    %716 = vmatprep.subr.mxu0 0.0
    %717 = vmatpush1.msra.mxu0 0.0
    %718 = vmatprep.subr.mxu0 0.0
    %719 = vmatpush1.msra.mxu0 0.0
    %720 = vmatprep.subr.mxu0 0.0
    %721 = vmatpush1.msra.mxu0 0.0
    %722 = vmatprep.subr.mxu0 0.0
    %723 = vmatpush1.msra.mxu0 0.0
    %724 = vmatprep.subr.mxu0 0.0
    %725 = vmatpush1.msra.mxu0 0.0
    %726 = vmatprep.subr.mxu0 0.0
    %727 = vmatpush1.msra.mxu0 0.0
    %728 = vmatprep.subr.mxu0 0.0
    %729 = vmatpush1.msra.mxu0 0.0
    %730 = vmatprep.subr.mxu0 0.0
    %731 = vmatpush1.msra.mxu0 0.0
    %732 = vmatprep.subr.mxu0 0.0
    %733 = vmatpush1.msra.mxu0 0.0
    %734 = vmatprep.subr.mxu0 0.0
    %735 = vmatpush1.msra.mxu0 0.0
    %736 = vmatprep.subr.mxu0 0.0
    %737 = vmatpush1.msra.mxu0 0.0
    %738 = vmatprep.subr.mxu0 0.0
    %739 = vmatpush1.msra.mxu0 0.0
    %740 = vmatprep.subr.mxu0 0.0
    %741 = vmatpush1.msra.mxu0 0.0
    %742 = vmatprep.subr.mxu0 0.0
    %743 = vmatpush1.msra.mxu0 0.0
    %744 = vmatprep.subr.mxu0 0.0
    %745 = vmatpush1.msra.mxu0 0.0
    %746 = vmatprep.subr.mxu0 0.0
    %747 = vmatpush1.msra.mxu0 0.0
    %748 = vmatprep.subr.mxu0 0.0
    %749 = vmatpush1.msra.mxu0 0.0
    %750 = vmatprep.subr.mxu0 0.0
    %751 = vmatpush1.msra.mxu0 0.0
    %752 = vmatprep.subr.mxu0 0.0
    %753 = vmatpush1.msra.mxu0 0.0
    %754 = vmatprep.subr.mxu0 0.0
    %755 = vmatpush1.msra.mxu0 0.0
    %756 = vmatprep.subr.mxu0 0.0
    %757 = vmatpush1.msra.mxu0 0.0
    %758 = vmatprep.mubr.f32.mxu0 0.0
    %759 = vmatmul.mubr.f32.gmra.mrb[0].mxu0 %v692
    %v760 = vpop.f32.mrb[0].mxu0
    %v761 = vadd.f32 0.0, %v760
    %v762 = vpop.f32.mrb[0].mxu0
    %v763 = vadd.f32 0.0, %v762
    %764 = vdwg.mxu0
    %v765 = vadd.f32 %v253, %v761
    %v766 = vxor.u32 %v765, 2147483648
    %v767 = vmul.f32 %v766, 1.442695
    %v768 = vpow.pop %v767
    %v769 = vadd.f32 %v768, 1.0
    %v770 = vrcp.pop %v769
    %v771 = vmul.f32 1.0, %v770
    %v772 = vadd.f32 %v763, %v360
    %v773 = vmul.f32 %v771, %v772
    %v774 = vadd.f32 %v255, %v773
    %v775 = vtanh.pop %v774
    %v776 = vsub.f32 1.0, %v771
    %778 = vrot.lane.b32.xlu0 %v775, 64
    %v779 = vpop.permute.xlu0 %778
    %v781 = vmul.f32 %v776, %v779
    %v783 = vmul.f32 %v771, %v689
    %v784 = vadd.f32 %v781, %v783
    %786 = vrot.lane.b32.xlu0 %v784, 64
    %v787 = vpop.permute.xlu0 %786
    %v788 = vsel %vm274, %v787, 0
    %790 = vmatprep.subr.mxu0 %v258
    %791 = vmatpush1.msra.mxu0 %v257
    %792 = vmatprep.subr.mxu0 %v260
    %793 = vmatpush1.msra.mxu0 %v259
    %794 = vmatprep.subr.mxu0 %v262
    %795 = vmatpush1.msra.mxu0 %v261
    %796 = vmatprep.subr.mxu0 %v264
    %797 = vmatpush1.msra.mxu0 %v263
    %798 = vmatprep.subr.mxu0 %v266
    %799 = vmatpush1.msra.mxu0 %v265
    %800 = vmatprep.subr.mxu0 %v268
    %801 = vmatpush1.msra.mxu0 %v267
    %802 = vmatprep.subr.mxu0 %v270
    %803 = vmatpush1.msra.mxu0 %v269
    %804 = vmatprep.subr.mxu0 %v272
    %805 = vmatpush1.msra.mxu0 %v271
    %806 = vmatprep.subr.mxu0 0.0
    %807 = vmatpush1.msra.mxu0 0.0
    %808 = vmatprep.subr.mxu0 0.0
    %809 = vmatpush1.msra.mxu0 0.0
    %810 = vmatprep.subr.mxu0 0.0
    %811 = vmatpush1.msra.mxu0 0.0
    %812 = vmatprep.subr.mxu0 0.0
    %813 = vmatpush1.msra.mxu0 0.0
    %814 = vmatprep.subr.mxu0 0.0
    %815 = vmatpush1.msra.mxu0 0.0
    %816 = vmatprep.subr.mxu0 0.0
    %817 = vmatpush1.msra.mxu0 0.0
    %818 = vmatprep.subr.mxu0 0.0
    %819 = vmatpush1.msra.mxu0 0.0
    %820 = vmatprep.subr.mxu0 0.0
    %821 = vmatpush1.msra.mxu0 0.0
    %822 = vmatprep.subr.mxu0 0.0
    %823 = vmatpush1.msra.mxu0 0.0
    %824 = vmatprep.subr.mxu0 0.0
    %825 = vmatpush1.msra.mxu0 0.0
    %826 = vmatprep.subr.mxu0 0.0
    %827 = vmatpush1.msra.mxu0 0.0
    %828 = vmatprep.subr.mxu0 0.0
    %829 = vmatpush1.msra.mxu0 0.0
    %830 = vmatprep.subr.mxu0 0.0
    %831 = vmatpush1.msra.mxu0 0.0
    %832 = vmatprep.subr.mxu0 0.0
    %833 = vmatpush1.msra.mxu0 0.0
    %834 = vmatprep.subr.mxu0 0.0
    %835 = vmatpush1.msra.mxu0 0.0
    %836 = vmatprep.subr.mxu0 0.0
    %837 = vmatpush1.msra.mxu0 0.0
    %838 = vmatprep.subr.mxu0 0.0
    %839 = vmatpush1.msra.mxu0 0.0
    %840 = vmatprep.subr.mxu0 0.0
    %841 = vmatpush1.msra.mxu0 0.0
    %842 = vmatprep.subr.mxu0 0.0
    %843 = vmatpush1.msra.mxu0 0.0
    %844 = vmatprep.subr.mxu0 0.0
    %845 = vmatpush1.msra.mxu0 0.0
    %846 = vmatprep.subr.mxu0 0.0
    %847 = vmatpush1.msra.mxu0 0.0
    %848 = vmatprep.subr.mxu0 0.0
    %849 = vmatpush1.msra.mxu0 0.0
    %850 = vmatprep.subr.mxu0 0.0
    %851 = vmatpush1.msra.mxu0 0.0
    %852 = vmatprep.subr.mxu0 0.0
    %853 = vmatpush1.msra.mxu0 0.0
    %854 = vmatprep.mubr.f32.mxu0 0.0
    %855 = vmatmul.mubr.f32.gmra.mrb[0].mxu0 %v788
    %v856 = vpop.f32.mrb[0].mxu0
    %v857 = vadd.f32 0.0, %v856
    %v858 = vpop.f32.mrb[0].mxu0
    %v859 = vadd.f32 0.0, %v858
    %860 = vdwg.mxu0
    %v862 = vrot.slane %v857, 6
    %v864 = vadd.f32 %v253, %v862
    %v865 = vxor.u32 %v864, 2147483648
    %v866 = vmul.f32 %v865, 1.442695
    %v867 = vpow.pop %v866
    %v868 = vadd.f32 %v867, 1.0
    %v869 = vrcp.pop %v868
    %v870 = vmul.f32 1.0, %v869
    %v871 = vadd.f32 %v859, %v360
    %v873 = vrot.slane %v871, 6
    %v875 = vmul.f32 %v870, %v873
    %v876 = vadd.f32 %v255, %v875
    %v877 = vtanh.pop %v876
    %v878 = vsub.f32 1.0, %v870
    %880 = vrot.lane.b32.xlu0 %v877, 64
    %v881 = vpop.permute.xlu0 %880
    %v883 = vmul.f32 %v878, %v881
    %v884 = vrot.slane %v784, 6
    %v886 = vmul.f32 %v870, %v884
    %v887 = vadd.f32 %v883, %v886
    %v889 = vrot.slane %v887, 2
    %890 = vrot.lane.b32.xlu0 %v889, 64
    %v891 = vpop.permute.xlu0 %890
    %v892 = vsel %vm274, %v891, 0
    %894 = vmatprep.subr.mxu0 %v258
    %895 = vmatpush1.msra.mxu0 %v257
    %896 = vmatprep.subr.mxu0 %v260
    %897 = vmatpush1.msra.mxu0 %v259
    %898 = vmatprep.subr.mxu0 %v262
    %899 = vmatpush1.msra.mxu0 %v261
    %900 = vmatprep.subr.mxu0 %v264
    %901 = vmatpush1.msra.mxu0 %v263
    %902 = vmatprep.subr.mxu0 %v266
    %903 = vmatpush1.msra.mxu0 %v265
    %904 = vmatprep.subr.mxu0 %v268
    %905 = vmatpush1.msra.mxu0 %v267
    %906 = vmatprep.subr.mxu0 %v270
    %907 = vmatpush1.msra.mxu0 %v269
    %908 = vmatprep.subr.mxu0 %v272
    %909 = vmatpush1.msra.mxu0 %v271
    %910 = vmatprep.subr.mxu0 0.0
    %911 = vmatpush1.msra.mxu0 0.0
    %912 = vmatprep.subr.mxu0 0.0
    %913 = vmatpush1.msra.mxu0 0.0
    %914 = vmatprep.subr.mxu0 0.0
    %915 = vmatpush1.msra.mxu0 0.0
    %916 = vmatprep.subr.mxu0 0.0
    %917 = vmatpush1.msra.mxu0 0.0
    %918 = vmatprep.subr.mxu0 0.0
    %919 = vmatpush1.msra.mxu0 0.0
    %920 = vmatprep.subr.mxu0 0.0
    %921 = vmatpush1.msra.mxu0 0.0
    %922 = vmatprep.subr.mxu0 0.0
    %923 = vmatpush1.msra.mxu0 0.0
    %924 = vmatprep.subr.mxu0 0.0
    %925 = vmatpush1.msra.mxu0 0.0
    %926 = vmatprep.subr.mxu0 0.0
    %927 = vmatpush1.msra.mxu0 0.0
    %928 = vmatprep.subr.mxu0 0.0
    %929 = vmatpush1.msra.mxu0 0.0
    %930 = vmatprep.subr.mxu0 0.0
    %931 = vmatpush1.msra.mxu0 0.0
    %932 = vmatprep.subr.mxu0 0.0
    %933 = vmatpush1.msra.mxu0 0.0
    %934 = vmatprep.subr.mxu0 0.0
    %935 = vmatpush1.msra.mxu0 0.0
    %936 = vmatprep.subr.mxu0 0.0
    %937 = vmatpush1.msra.mxu0 0.0
    %938 = vmatprep.subr.mxu0 0.0
    %939 = vmatpush1.msra.mxu0 0.0
    %940 = vmatprep.subr.mxu0 0.0
    %941 = vmatpush1.msra.mxu0 0.0
    %942 = vmatprep.subr.mxu0 0.0
    %943 = vmatpush1.msra.mxu0 0.0
    %944 = vmatprep.subr.mxu0 0.0
    %945 = vmatpush1.msra.mxu0 0.0
    %946 = vmatprep.subr.mxu0 0.0
    %947 = vmatpush1.msra.mxu0 0.0
    %948 = vmatprep.subr.mxu0 0.0
    %949 = vmatpush1.msra.mxu0 0.0
    %950 = vmatprep.subr.mxu0 0.0
    %951 = vmatpush1.msra.mxu0 0.0
    %952 = vmatprep.subr.mxu0 0.0
    %953 = vmatpush1.msra.mxu0 0.0
    %954 = vmatprep.subr.mxu0 0.0
    %955 = vmatpush1.msra.mxu0 0.0
    %956 = vmatprep.subr.mxu0 0.0
    %957 = vmatpush1.msra.mxu0 0.0
    %958 = vmatprep.mubr.f32.mxu0 0.0
    %959 = vmatmul.mubr.f32.gmra.mrb[0].mxu0 %v892
    %v960 = vpop.f32.mrb[0].mxu0
    %v961 = vadd.f32 0.0, %v960
    %v962 = vpop.f32.mrb[0].mxu0
    %v963 = vadd.f32 0.0, %v962
    %964 = vdwg.mxu0
    %v966 = vrot.slane %v961, 4
    %v968 = vadd.f32 %v253, %v966
    %v969 = vxor.u32 %v968, 2147483648
    %v970 = vmul.f32 %v969, 1.442695
    %v971 = vpow.pop %v970
    %v972 = vadd.f32 %v971, 1.0
    %v973 = vrcp.pop %v972
    %v974 = vmul.f32 1.0, %v973
    %v975 = vadd.f32 %v963, %v360
    %v977 = vrot.slane %v975, 4
    %v979 = vmul.f32 %v974, %v977
    %v980 = vadd.f32 %v255, %v979
    %v981 = vtanh.pop %v980
    %v982 = vsub.f32 1.0, %v974
    %984 = vrot.lane.b32.xlu0 %v981, 64
    %v985 = vpop.permute.xlu0 %984
    %v987 = vmul.f32 %v982, %v985
    %v988 = vrot.slane %v887, 6
    %v990 = vmul.f32 %v974, %v988
    %v991 = vadd.f32 %v987, %v990
    %v993 = vrot.slane %v991, 4
    %994 = vrot.lane.b32.xlu0 %v993, 64
    %v995 = vpop.permute.xlu0 %994
    %v996 = vsel %vm274, %v995, 0
    %998 = vmatprep.subr.mxu0 %v258
    %999 = vmatpush1.msra.mxu0 %v257
    %1000 = vmatprep.subr.mxu0 %v260
    %1001 = vmatpush1.msra.mxu0 %v259
    %1002 = vmatprep.subr.mxu0 %v262
    %1003 = vmatpush1.msra.mxu0 %v261
    %1004 = vmatprep.subr.mxu0 %v264
    %1005 = vmatpush1.msra.mxu0 %v263
    %1006 = vmatprep.subr.mxu0 %v266
    %1007 = vmatpush1.msra.mxu0 %v265
    %1008 = vmatprep.subr.mxu0 %v268
    %1009 = vmatpush1.msra.mxu0 %v267
    %1010 = vmatprep.subr.mxu0 %v270
    %1011 = vmatpush1.msra.mxu0 %v269
    %1012 = vmatprep.subr.mxu0 %v272
    %1013 = vmatpush1.msra.mxu0 %v271
    %1014 = vmatprep.subr.mxu0 0.0
    %1015 = vmatpush1.msra.mxu0 0.0
    %1016 = vmatprep.subr.mxu0 0.0
    %1017 = vmatpush1.msra.mxu0 0.0
    %1018 = vmatprep.subr.mxu0 0.0
    %1019 = vmatpush1.msra.mxu0 0.0
    %1020 = vmatprep.subr.mxu0 0.0
    %1021 = vmatpush1.msra.mxu0 0.0
    %1022 = vmatprep.subr.mxu0 0.0
    %1023 = vmatpush1.msra.mxu0 0.0
    %1024 = vmatprep.subr.mxu0 0.0
    %1025 = vmatpush1.msra.mxu0 0.0
    %1026 = vmatprep.subr.mxu0 0.0
    %1027 = vmatpush1.msra.mxu0 0.0
    %1028 = vmatprep.subr.mxu0 0.0
    %1029 = vmatpush1.msra.mxu0 0.0
    %1030 = vmatprep.subr.mxu0 0.0
    %1031 = vmatpush1.msra.mxu0 0.0
    %1032 = vmatprep.subr.mxu0 0.0
    %1033 = vmatpush1.msra.mxu0 0.0
    %1034 = vmatprep.subr.mxu0 0.0
    %1035 = vmatpush1.msra.mxu0 0.0
    %1036 = vmatprep.subr.mxu0 0.0
    %1037 = vmatpush1.msra.mxu0 0.0
    %1038 = vmatprep.subr.mxu0 0.0
    %1039 = vmatpush1.msra.mxu0 0.0
    %1040 = vmatprep.subr.mxu0 0.0
    %1041 = vmatpush1.msra.mxu0 0.0
    %1042 = vmatprep.subr.mxu0 0.0
    %1043 = vmatpush1.msra.mxu0 0.0
    %1044 = vmatprep.subr.mxu0 0.0
    %1045 = vmatpush1.msra.mxu0 0.0
    %1046 = vmatprep.subr.mxu0 0.0
    %1047 = vmatpush1.msra.mxu0 0.0
    %1048 = vmatprep.subr.mxu0 0.0
    %1049 = vmatpush1.msra.mxu0 0.0
    %1050 = vmatprep.subr.mxu0 0.0
    %1051 = vmatpush1.msra.mxu0 0.0
    %1052 = vmatprep.subr.mxu0 0.0
    %1053 = vmatpush1.msra.mxu0 0.0
    %1054 = vmatprep.subr.mxu0 0.0
    %1055 = vmatpush1.msra.mxu0 0.0
    %1056 = vmatprep.subr.mxu0 0.0
    %1057 = vmatpush1.msra.mxu0 0.0
    %1058 = vmatprep.subr.mxu0 0.0
    %1059 = vmatpush1.msra.mxu0 0.0
    %1060 = vmatprep.subr.mxu0 0.0
    %1061 = vmatpush1.msra.mxu0 0.0
    %1062 = vmatprep.mubr.f32.mxu0 0.0
    %1063 = vmatmul.mubr.f32.gmra.mrb[0].mxu0 %v996
    %v1064 = vpop.f32.mrb[0].mxu0
    %v1065 = vadd.f32 0.0, %v1064
    %v1066 = vpop.f32.mrb[0].mxu0
    %v1067 = vadd.f32 0.0, %v1066
    %1068 = vdwg.mxu0
    %v1070 = vrot.slane %v1065, 2
    %v1072 = vadd.f32 %v253, %v1070
    %v1073 = vxor.u32 %v1072, 2147483648
    %v1074 = vmul.f32 %v1073, 1.442695
    %v1075 = vpow.pop %v1074
    %v1076 = vadd.f32 %v1075, 1.0
    %v1077 = vrcp.pop %v1076
    %v1078 = vmul.f32 1.0, %v1077
    %v1079 = vadd.f32 %v1067, %v360
    %v1081 = vrot.slane %v1079, 2
    %v1083 = vmul.f32 %v1078, %v1081
    %v1084 = vadd.f32 %v255, %v1083
    %v1085 = vtanh.pop %v1084
    %v1086 = vsub.f32 1.0, %v1078
    %1088 = vrot.lane.b32.xlu0 %v1085, 64
    %v1089 = vpop.permute.xlu0 %1088
    %v1091 = vmul.f32 %v1086, %v1089
    %v1092 = vrot.slane %v991, 6
    %v1094 = vmul.f32 %v1078, %v1092
    %v1095 = vadd.f32 %v1091, %v1094
    %vm1096 = vcmask 1041408
    %v1097 = vsel %vm1096, %v376, %v479
    %vm1098 = vcmask 1043456
    %v1099 = vsel %vm1098, %v1097, %v583
    %vm1100 = vcmask 1045504
    %v1101 = vsel %vm1100, %v1099, %v687
    %v1102 = vsel %vm1096, %v784, %v887
    %v1103 = vsel %vm1098, %v1102, %v991
    %v1104 = vsel %vm1100, %v1103, %v1095
    %v1106 = vrot.slane %v1095, 6
    %v1108 = vrot.slane %v991, 2
    %v1110 = vrot.slane %v784, 2
    %v1112 = vrot.slane %v583, 2
    %v1114 = vrot.slane %v376, 2
    %v1116 = vsel %vm1096, %v1106, %v1108
    %v1117 = vsel %vm1098, %v1116, %v988
    %v1118 = vsel %vm1100, %v1117, %v1110
    %v1119 = vsel %vm1096, %v689, %v1112
    %v1120 = vsel %vm1098, %v1119, %v580
    %v1121 = vsel %vm1100, %v1120, %v1114
    %v1122 = vld [vmem:[%s8] sm:$0xff]
    %v1123 = vld [vmem:[%s8 + $0x8] sm:$0xff]
    %v1124 = vld [vmem:[%s8 + $0x10] sm:$0xff]
    %v1125 = vld [vmem:[%s8 + $0x18] sm:$0xff]
    %v1126 = vld [vmem:[%s9] sm:$0xff]
    %v1127 = vld [vmem:[%s9 + $0x8] sm:$0xff]
    %v1128 = vld [vmem:[%s9 + $0x10] sm:$0xff]
    %v1129 = vld [vmem:[%s9 + $0x18] sm:$0xff]
    %1132 = vrot.lane.b32.xlu0 %v1118, 32
    %v1133 = vpop.permute.xlu0 %1132
    %1134 = vrot.lane.b32.xlu0 %v1121, 32
    %v1135 = vpop.permute.xlu0 %1134
    %v1136 = vsel %vm153, %v1133, 0
    %v1138 = vsel %vm153, %v1135, 0
    %1140 = vmatprep.subr.mxu0 0.0
    %1141 = vmatpush1.msra.mxu0 %v1126
    %1142 = vmatprep.subr.mxu0 0.0
    %1143 = vmatpush1.msra.mxu0 %v1127
    %1144 = vmatprep.subr.mxu0 0.0
    %1145 = vmatpush1.msra.mxu0 %v1128
    %1146 = vmatprep.subr.mxu0 0.0
    %1147 = vmatpush1.msra.mxu0 %v1129
    %1148 = vmatprep.subr.mxu0 0.0
    %1149 = vmatpush1.msra.mxu0 0.0
    %1150 = vmatprep.subr.mxu0 0.0
    %1151 = vmatpush1.msra.mxu0 0.0
    %1152 = vmatprep.subr.mxu0 0.0
    %1153 = vmatpush1.msra.mxu0 0.0
    %1154 = vmatprep.subr.mxu0 0.0
    %1155 = vmatpush1.msra.mxu0 0.0
    %1156 = vmatprep.subr.mxu0 0.0
    %1157 = vmatpush1.msra.mxu0 0.0
    %1158 = vmatprep.subr.mxu0 0.0
    %1159 = vmatpush1.msra.mxu0 0.0
    %1160 = vmatprep.subr.mxu0 0.0
    %1161 = vmatpush1.msra.mxu0 0.0
    %1162 = vmatprep.subr.mxu0 0.0
    %1163 = vmatpush1.msra.mxu0 0.0
    %1164 = vmatprep.subr.mxu0 0.0
    %1165 = vmatpush1.msra.mxu0 0.0
    %1166 = vmatprep.subr.mxu0 0.0
    %1167 = vmatpush1.msra.mxu0 0.0
    %1168 = vmatprep.subr.mxu0 0.0
    %1169 = vmatpush1.msra.mxu0 0.0
    %1170 = vmatprep.subr.mxu0 0.0
    %1171 = vmatpush1.msra.mxu0 0.0
    %1172 = vmatprep.subr.mxu0 0.0
    %1173 = vmatpush1.msra.mxu0 0.0
    %1174 = vmatprep.subr.mxu0 0.0
    %1175 = vmatpush1.msra.mxu0 0.0
    %1176 = vmatprep.subr.mxu0 0.0
    %1177 = vmatpush1.msra.mxu0 0.0
    %1178 = vmatprep.subr.mxu0 0.0
    %1179 = vmatpush1.msra.mxu0 0.0
    %1180 = vmatprep.subr.mxu0 0.0
    %1181 = vmatpush1.msra.mxu0 0.0
    %1182 = vmatprep.subr.mxu0 0.0
    %1183 = vmatpush1.msra.mxu0 0.0
    %1184 = vmatprep.subr.mxu0 0.0
    %1185 = vmatpush1.msra.mxu0 0.0
    %1186 = vmatprep.subr.mxu0 0.0
    %1187 = vmatpush1.msra.mxu0 0.0
    %1188 = vmatprep.subr.mxu0 0.0
    %1189 = vmatpush1.msra.mxu0 0.0
    %1190 = vmatprep.subr.mxu0 0.0
    %1191 = vmatpush1.msra.mxu0 0.0
    %1192 = vmatprep.subr.mxu0 0.0
    %1193 = vmatpush1.msra.mxu0 0.0
    %1194 = vmatprep.subr.mxu0 0.0
    %1195 = vmatpush1.msra.mxu0 0.0
    %1196 = vmatprep.subr.mxu0 0.0
    %1197 = vmatpush1.msra.mxu0 0.0
    %1198 = vmatprep.subr.mxu0 0.0
    %1199 = vmatpush1.msra.mxu0 0.0
    %1200 = vmatprep.subr.mxu0 0.0
    %1201 = vmatpush1.msra.mxu0 0.0
    %1202 = vmatprep.subr.mxu0 0.0
    %1203 = vmatpush1.msra.mxu0 0.0
    %1204 = vmatprep.mubr.f32.mxu0 0.0
    %1205 = vmatmul.mubr.f32.gmra.mrb[0].mxu0 %v1136
    %v1206 = vpop.f32.mrb[0].mxu0
    %v1207 = vadd.f32 0.0, %v1206
    %v1208 = vpop.f32.mrb[0].mxu0
    %1209 = vmatprep.mubr.f32.mxu0 0.0
    %1210 = vmatmul.mubr.f32.gmra.mrb[0].mxu0 %v1138
    %v1211 = vpop.f32.mrb[0].mxu0
    %v1212 = vadd.f32 0.0, %v1211
    %v1213 = vpop.f32.mrb[0].mxu0
    %1214 = vdwg.mxu0
    %1217 = vrot.lane.b32.xlu0 %v1101, 64
    %v1218 = vpop.permute.xlu0 %1217
    %1219 = vrot.lane.b32.xlu0 %v1104, 64
    %v1220 = vpop.permute.xlu0 %1219
    %v1221 = vsel %vm153, %v1218, 0
    %v1223 = vsel %vm153, %v1220, 0
    %1225 = vmatprep.subr.mxu0 0.0
    %1226 = vmatpush1.msra.mxu0 %v1122
    %1227 = vmatprep.subr.mxu0 0.0
    %1228 = vmatpush1.msra.mxu0 %v1123
    %1229 = vmatprep.subr.mxu0 0.0
    %1230 = vmatpush1.msra.mxu0 %v1124
    %1231 = vmatprep.subr.mxu0 0.0
    %1232 = vmatpush1.msra.mxu0 %v1125
    %1233 = vmatprep.subr.mxu0 0.0
    %1234 = vmatpush1.msra.mxu0 0.0
    %1235 = vmatprep.subr.mxu0 0.0
    %1236 = vmatpush1.msra.mxu0 0.0
    %1237 = vmatprep.subr.mxu0 0.0
    %1238 = vmatpush1.msra.mxu0 0.0
    %1239 = vmatprep.subr.mxu0 0.0
    %1240 = vmatpush1.msra.mxu0 0.0
    %1241 = vmatprep.subr.mxu0 0.0
    %1242 = vmatpush1.msra.mxu0 0.0
    %1243 = vmatprep.subr.mxu0 0.0
    %1244 = vmatpush1.msra.mxu0 0.0
    %1245 = vmatprep.subr.mxu0 0.0
    %1246 = vmatpush1.msra.mxu0 0.0
    %1247 = vmatprep.subr.mxu0 0.0
    %1248 = vmatpush1.msra.mxu0 0.0
    %1249 = vmatprep.subr.mxu0 0.0
    %1250 = vmatpush1.msra.mxu0 0.0
    %1251 = vmatprep.subr.mxu0 0.0
    %1252 = vmatpush1.msra.mxu0 0.0
    %1253 = vmatprep.subr.mxu0 0.0
    %1254 = vmatpush1.msra.mxu0 0.0
    %1255 = vmatprep.subr.mxu0 0.0
    %1256 = vmatpush1.msra.mxu0 0.0
    %1257 = vmatprep.subr.mxu0 0.0
    %1258 = vmatpush1.msra.mxu0 0.0
    %1259 = vmatprep.subr.mxu0 0.0
    %1260 = vmatpush1.msra.mxu0 0.0
    %1261 = vmatprep.subr.mxu0 0.0
    %1262 = vmatpush1.msra.mxu0 0.0
    %1263 = vmatprep.subr.mxu0 0.0
    %1264 = vmatpush1.msra.mxu0 0.0
    %1265 = vmatprep.subr.mxu0 0.0
    %1266 = vmatpush1.msra.mxu0 0.0
    %1267 = vmatprep.subr.mxu0 0.0
    %1268 = vmatpush1.msra.mxu0 0.0
    %1269 = vmatprep.subr.mxu0 0.0
    %1270 = vmatpush1.msra.mxu0 0.0
    %1271 = vmatprep.subr.mxu0 0.0
    %1272 = vmatpush1.msra.mxu0 0.0
    %1273 = vmatprep.subr.mxu0 0.0
    %1274 = vmatpush1.msra.mxu0 0.0
    %1275 = vmatprep.subr.mxu0 0.0
    %1276 = vmatpush1.msra.mxu0 0.0
    %1277 = vmatprep.subr.mxu0 0.0
    %1278 = vmatpush1.msra.mxu0 0.0
    %1279 = vmatprep.subr.mxu0 0.0
    %1280 = vmatpush1.msra.mxu0 0.0
    %1281 = vmatprep.subr.mxu0 0.0
    %1282 = vmatpush1.msra.mxu0 0.0
    %1283 = vmatprep.subr.mxu0 0.0
    %1284 = vmatpush1.msra.mxu0 0.0
    %1285 = vmatprep.subr.mxu0 0.0
    %1286 = vmatpush1.msra.mxu0 0.0
    %1287 = vmatprep.subr.mxu0 0.0
    %1288 = vmatpush1.msra.mxu0 0.0
    %1289 = vmatprep.mubr.f32.mxu0 0.0
    %1290 = vmatmul.mubr.f32.gmra.mrb[0].mxu0 %v1221
    %v1291 = vpop.f32.mrb[0].mxu0
    %v1292 = vadd.f32 %v1207, %v1291
    %v1293 = vpop.f32.mrb[0].mxu0
    %1294 = vmatprep.mubr.f32.mxu0 0.0
    %1295 = vmatmul.mubr.f32.gmra.mrb[0].mxu0 %v1223
    %v1296 = vpop.f32.mrb[0].mxu0
    %v1297 = vadd.f32 %v1212, %v1296
    %v1298 = vpop.f32.mrb[0].mxu0
    %1299 = vdwg.mxu0
    %v1300 = vld [vmem:[%s10] sm:$0x1]
    %v1302 = vlaneseq
    %v1303 = vshrl.u32 %v1302, 7
    %v1304 = vsub.s32 0, %v1303
    %v1305 = vrot.slane %v1300, %v1304
    %v1307 = vadd.f32 %v1292, %v1305
    %v1308 = vadd.f32 %v1297, %v1305
    %vm1309 = vcmask 97280
    %1310 = vst.msk [vmem:[#allocation5] sm:$0xff] %vm1309, %v1307
    %1311 = vst.msk [vmem:[#allocation5 + $0x8] sm:$0xff] %vm1309, %v1308
    // Predicated region
    $region50: #{tpu_custom_call.1} parent=1 // pred_check
      _
    $region51: #{tpu_custom_call.1} parent=1 // pred_check_branch
      %1313 = sbr.rel (0) target = $region53
    $region52: #{tpu_custom_call.1} parent=1 // pred_region
      %s1315 = ssub.s32 256, 256
      %1316 = vsyncadd [#allocation4], %s1315
      %s1317 = sshll.u32 [#allocation5], 4
      %s1318 = int_to_ptr.vmem [resolvable:$true] %s1317
      %1323 = dma.vmem_to_hbm [thread:$0]  %s1318, 256, %s11, [#allocation4], 128, 128, 8
    $region53: #{tpu_custom_call.1} parent=1 // pred_fallthru
      _
    // Predicated region
    $region54: #{tpu_custom_call.1} parent=1 // pred_check
      _
    $region55: #{tpu_custom_call.1} parent=1 // pred_check_branch
      %1325 = sbr.rel (0) target = $region57
    $region56: #{tpu_custom_call.1} parent=1 // pred_region
      %1326 = dma.done [#allocation4], 256
    $region57: #{tpu_custom_call.1} parent=1 // pred_fallthru
      _
    %1327 = vsyncpa [#allocation3], 1
    %1328 = vsyncpa [#allocation4], 1

</llo_original>
